<compile_context>
chip_gen: v5e
topology: v5e:2x2
jax: 0.10.0
libtpu: 0.0.40
codegen_flags: <defaults>
</compile_context>

<pallas_src>
import jax
import jax.numpy as jnp
from jax import lax
from jax.experimental import pallas as pl
from jax.experimental.pallas import tpu as pltpu

F32 = jnp.float32
BF16 = jnp.bfloat16


def _vmem():
    return pl.BlockSpec(memory_space=pltpu.MemorySpace.VMEM)


# ----------------------------------------------------------------------------
# in-kernel GAT layer (dense adjacency), lane-dense [N, heads*dout] output
# ----------------------------------------------------------------------------
def _gat(h, w, a, neg_bias, heads, apply_elu):
    """h: [N, din] f32; w: [din, H*dout] bf16; a: [H*dout, 2H] bf16 (el | er);
    neg_bias: [N, N] f32 (0 where edge j->i exists, -1e9 elsewhere)."""
    n = h.shape[0]
    width = w.shape[1]
    dout = width // heads

    wh = jnp.dot(h.astype(BF16), w, preferred_element_type=F32)       # [N, H*dout]
    wh_b = wh.astype(BF16)
    scores = jnp.dot(wh_b, a, preferred_element_type=F32)             # [N, 2H]
    er_rows = scores[:, heads:2 * heads].T                            # [H, N] — one XLU transpose

    # Stack every head's attention logits: row h*N+i, col j == el[i,h] + er[j,h]
    e_blocks = []
    for hd in range(heads):                                           # tiny static head count
        el = scores[:, hd:hd + 1]                                     # [N, 1] lane slice
        er = er_rows[hd:hd + 1, :]                                    # [1, N] sublane slice
        e_blocks.append(el + er)                                      # [N, N] broadcast add (VPU)
    e = jnp.concatenate(e_blocks, axis=0)                             # [H*N, N]

    # Batched LeakyReLU(0.2) + edge mask + neighbor softmax — one pass on the stack.
    e = jnp.where(e > 0, e, 0.2 * e) + jnp.tile(neg_bias, (heads, 1))
    e = e - jnp.max(e, axis=1, keepdims=True)
    p = jnp.exp(e)
    inv = pl.reciprocal(jnp.sum(p, axis=1, keepdims=True), approx=True)
    alpha = (p * inv).astype(BF16)                                    # [H*N, N]

    # Per-head aggregation on static slices (no masked full-width matmul).
    outs = []
    for hd in range(heads):
        a_h = alpha[hd * n:(hd + 1) * n, :]                           # [N, N] sublane slice
        wh_h = wh_b[:, hd * dout:(hd + 1) * dout]                     # [N, dout] lane slice
        outs.append(jnp.dot(a_h, wh_h, preferred_element_type=F32))
    out = jnp.concatenate(outs, axis=1)                               # [N, H*dout]

    if apply_elu:
        # clamp the exp argument so the untaken branch never produces inf
        out = jnp.where(out > 0, out, jnp.exp(jnp.minimum(out, 0.0)) - 1.0)
    return out


# ----------------------------------------------------------------------------
# single fused kernel: node encode -> GAT x2 -> gather/select -> LSTM decode
# ----------------------------------------------------------------------------
def _hiding_kernel(ids_ref, lens_ref, adj_ref, embed_ref,
                   w1_ref, a1_ref, w2_ref, a2_ref,
                   vidx_ref, wm_ref,
                   wih_ref, whh_ref, b_ref, wout_ref, bout_ref,
                   out_ref):
    n, l_tok = ids_ref.shape
    vocab_n = embed_ref.shape[0]
    b_sz, steps, _ = out_ref.shape
    hidden = whh_ref.shape[0]
    heads1 = a1_ref.shape[1] // 2
    heads2 = a2_ref.shape[1] // 2
    d2 = w2_ref.shape[1] // heads2

    # ---- node encoder: masked token counts -> one-hot-counts matmul + mean pool
    ids = ids_ref[...]                                       # [N, L] int32
    lens = lens_ref[...]                                      # [N, 1] int32
    pos = lax.broadcasted_iota(jnp.int32, (n, l_tok), 1)
    ids_m = jnp.where(pos < lens, ids, -1)                    # invalid tokens never match
    tok_iota = lax.broadcasted_iota(jnp.int32, (n, vocab_n), 1)
    counts = jnp.zeros((n, vocab_n), F32)
    for t in range(l_tok):                                    # static, small L
        counts = counts + (ids_m[:, t:t + 1] == tok_iota).astype(F32)
    h0 = jnp.dot(counts.astype(BF16), embed_ref[...], preferred_element_type=F32)
    inv_len = pl.reciprocal(jnp.maximum(lens.astype(F32), 1.0), approx=True)
    h0 = h0 * inv_len                                         # [N, Din] mean-pooled

    # ---- graph encoder: 2 GAT layers (shared adjacency bias computed once)
    neg_bias = jnp.where(adj_ref[...] > 0, 0.0, -1e9).astype(F32)   # [N, N]
    h1 = _gat(h0, w1_ref[...], a1_ref[...], neg_bias, heads1, apply_elu=True)   # [N, h1*d1]
    h2 = _gat(h1, w2_ref[...], a2_ref[...], neg_bias, heads2, apply_elu=False)  # [N, h2*d2]

    # ---- var-node row gather (one-hot matmul) + watermark-class head select
    vidx = vidx_ref[...]                                      # [B, 1] int32
    wm = wm_ref[...]                                          # [B, 1] int32
    node_iota = lax.broadcasted_iota(jnp.int32, (b_sz, n), 1)
    sel = (node_iota == vidx).astype(BF16)                    # [B, N]
    h_var = jnp.dot(sel, h2.astype(BF16), preferred_element_type=F32)   # [B, h2*d2]
    g = jnp.zeros((b_sz, d2), F32)
    for hd in range(heads2):                                  # static, 2**wm_len heads
        m = (wm == hd).astype(F32)                            # [B, 1]
        g = g + m * h_var[:, hd * d2:(hd + 1) * d2]

    # ---- LSTM decoder (gate order i,f,g,o like torch; fused bias b = b_ih + b_hh)
    whh = whh_ref[...]
    wout = wout_ref[...]
    xg = jnp.dot(g.astype(BF16), wih_ref[...], preferred_element_type=F32) + b_ref[...]  # [B, 4H]
    hcur = jnp.zeros((b_sz, hidden), F32)
    ccur = jnp.zeros((b_sz, hidden), F32)
    step_logits = []
    for t in range(steps):                                    # static unroll, steps small
        gates = xg + jnp.dot(hcur.astype(BF16), whh, preferred_element_type=F32)
        i = jax.nn.sigmoid(gates[:, 0:hidden])
        f = jax.nn.sigmoid(gates[:, hidden:2 * hidden])
        gg = jnp.tanh(gates[:, 2 * hidden:3 * hidden])
        o = jax.nn.sigmoid(gates[:, 3 * hidden:4 * hidden])
        ccur = f * ccur + i * gg
        hcur = o * jnp.tanh(ccur)
        step_logits.append(jnp.dot(hcur.astype(BF16), wout, preferred_element_type=F32))
    # ONE lane-dense [B, T, V] store; output-bias broadcast hoisted out of the loop.
    out_ref[...] = jnp.stack(step_logits, axis=1) + bout_ref[...]


# ----------------------------------------------------------------------------
# Hiding.forward wrapper — one pallas_call for the whole forward pass
# ----------------------------------------------------------------------------
def hiding_forward(params, cfg, watermarks_class, node_tok_ids, node_tok_lens,
                   adj, var_node_index_in_node_batch, pre_var_tok_lens,
                   var_tok_ids=None, var_tok_lens=None):
    # var_tok_ids / var_tok_lens are accepted (as in torch forward) but unused.
    del var_tok_ids, var_tok_lens, cfg
    B = int(watermarks_class.shape[0])
    # steps must be a static Python int (each distinct value retraces once).
    steps = int(max(pre_var_tok_lens))
    V = params["W_out"].shape[1]

    args = (
        node_tok_ids.astype(jnp.int32),                                   # [N, L]
        node_tok_lens.astype(jnp.int32).reshape(-1, 1),                   # [N, 1]
        adj.astype(jnp.float32),                                          # [N, N]
        params["embed"].astype(BF16),                                     # [Vn, Din]
        params["W1"].astype(BF16), params["A1"].astype(BF16),             # layer 1
        params["W2"].astype(BF16), params["A2"].astype(BF16),             # layer 2
        var_node_index_in_node_batch.astype(jnp.int32).reshape(-1, 1),    # [B, 1]
        watermarks_class.astype(jnp.int32).reshape(-1, 1),                # [B, 1]
        params["W_ih"].astype(BF16), params["W_hh"].astype(BF16),         # LSTM cell
        params["b"].astype(jnp.float32),                                  # fused bias (f32)
        params["W_out"].astype(BF16), params["b_out"].astype(jnp.float32),
    )

    return pl.pallas_call(
        _hiding_kernel,
        out_shape=jax.ShapeDtypeStruct((B, steps, V), jnp.float32),
        in_specs=[_vmem()] * len(args),
        out_specs=_vmem(),
        compiler_params=pltpu.CompilerParams(vmem_limit_bytes=32 * 1024 * 1024),
    )(*args)


def build_attention_block(a_l, a_r):
    """Pack per-head attention vectors into one [heads*dout, 2*heads] matrix so
    that Wh @ A yields (el_0..el_{H-1}, er_0..er_{H-1}) in one MXU pass."""
    heads, dout = a_l.shape
    A = jnp.zeros((heads * dout, 2 * heads), jnp.float32)
    for h in range(heads):
        A = A.at[h * dout:(h + 1) * dout, h].set(a_l[h])
        A = A.at[h * dout:(h + 1) * dout, heads + h].set(a_r[h])
    return A


# ----------------------------------------------------------------------------
if __name__ == "__main__":
    # --- synthetic config (small, shape-consistent with the module) ---
    cfg = dict(
        watermark_len=2,
        first_in=32,
        first_out=32,
        first_heads=2,
        second_out=32,
        second_heads=2 ** 2,     # 2 ** watermark_len
        hidden=32,
        vocab_size=128,
        node_vocab=64,
    )
    N_nodes, L_tok, batch = 16, 8, 2
    pre_var_tok_lens = [3, 5]

    key = jax.random.PRNGKey(0)
    ks = jax.random.split(key, 12)
    s = 0.1
    al1 = s * jax.random.normal(ks[2], (cfg["first_heads"], cfg["first_out"]), jnp.float32)
    ar1 = s * jax.random.normal(ks[3], (cfg["first_heads"], cfg["first_out"]), jnp.float32)
    al2 = s * jax.random.normal(ks[5], (cfg["second_heads"], cfg["second_out"]), jnp.float32)
    ar2 = s * jax.random.normal(ks[6], (cfg["second_heads"], cfg["second_out"]), jnp.float32)
    params = {
        "embed": s * jax.random.normal(ks[0], (cfg["node_vocab"], cfg["first_in"]), jnp.float32),
        "W1":    s * jax.random.normal(ks[1], (cfg["first_in"], cfg["first_heads"] * cfg["first_out"]), jnp.float32),
        "A1":    build_attention_block(al1, ar1),
        "W2":    s * jax.random.normal(ks[4], (cfg["first_heads"] * cfg["first_out"],
                                               cfg["second_heads"] * cfg["second_out"]), jnp.float32),
        "A2":    build_attention_block(al2, ar2),
        "W_ih":  s * jax.random.normal(ks[7], (cfg["second_out"], 4 * cfg["hidden"]), jnp.float32),
        "W_hh":  s * jax.random.normal(ks[8], (cfg["hidden"], 4 * cfg["hidden"]), jnp.float32),
        "b":     jnp.zeros((1, 4 * cfg["hidden"]), jnp.float32),   # == b_ih + b_hh of torch LSTMCell
        "W_out": s * jax.random.normal(ks[9], (cfg["hidden"], cfg["vocab_size"]), jnp.float32),
        "b_out": jnp.zeros((1, cfg["vocab_size"]), jnp.float32),
    }

    # --- deterministic example inputs ---
    node_tok_ids = jax.random.randint(ks[10], (N_nodes, L_tok), 0, cfg["node_vocab"], jnp.int32)
    node_tok_lens = jax.random.randint(ks[11], (N_nodes,), 1, L_tok + 1, jnp.int32)
    # ring graph + self loops, dense adjacency (adj[i, j] = 1 iff edge j -> i)
    idx = jnp.arange(N_nodes)
    adj = (jnp.eye(N_nodes, dtype=jnp.float32)
           + jnp.eye(N_nodes, dtype=jnp.float32)[(idx + 1) % N_nodes]
           + jnp.eye(N_nodes, dtype=jnp.float32)[(idx - 1) % N_nodes])
    adj = jnp.minimum(adj, 1.0)
    var_node_index_in_node_batch = jnp.array([2, 7], jnp.int32)
    watermarks_class = jnp.array([1, 3], jnp.int32)          # in [0, 2**wm_len)
    var_tok_ids = jnp.zeros((batch, L_tok), jnp.int32)        # unused by forward
    var_tok_lens = jnp.array(pre_var_tok_lens, jnp.int32)     # unused by forward

    var_logits = hiding_forward(params, cfg, watermarks_class, node_tok_ids,
                                node_tok_lens, adj, var_node_index_in_node_batch,
                                pre_var_tok_lens, var_tok_ids, var_tok_lens)
    var_logits = jax.block_until_ready(var_logits)

    assert var_logits.shape == (batch, max(pre_var_tok_lens), cfg["vocab_size"])
    assert var_logits.dtype == jnp.float32
    assert bool(jnp.all(jnp.isfinite(var_logits)))
    print("KERNEL_OK")
</pallas_src>

<mosaic_0001>
module attributes {stable_mosaic.version = 11 : i64} {
  func.func @_hiding_kernel(%arg0: memref<16x8xi32, #tpu.memory_space<vmem>>, %arg1: memref<16x1xi32, #tpu.memory_space<vmem>>, %arg2: memref<16x16xf32, #tpu.memory_space<vmem>>, %arg3: memref<64x32xbf16, #tpu.memory_space<vmem>>, %arg4: memref<32x64xbf16, #tpu.memory_space<vmem>>, %arg5: memref<64x4xbf16, #tpu.memory_space<vmem>>, %arg6: memref<64x128xbf16, #tpu.memory_space<vmem>>, %arg7: memref<128x8xbf16, #tpu.memory_space<vmem>>, %arg8: memref<2x1xi32, #tpu.memory_space<vmem>>, %arg9: memref<2x1xi32, #tpu.memory_space<vmem>>, %arg10: memref<32x128xbf16, #tpu.memory_space<vmem>>, %arg11: memref<32x128xbf16, #tpu.memory_space<vmem>>, %arg12: memref<1x128xf32, #tpu.memory_space<vmem>>, %arg13: memref<32x128xbf16, #tpu.memory_space<vmem>>, %arg14: memref<1x128xf32, #tpu.memory_space<vmem>>, %arg15: memref<2x5x128xf32, #tpu.memory_space<vmem>>) attributes {dimension_semantics = [], scalar_prefetch = 0 : i64, scratch_operands = 0 : i64, tpu.core_type = #tpu.core_type<tc>} {
    %c0 = arith.constant 0 : index
    %c0_0 = arith.constant 0 : index
    %0 = vector.load %arg0[%c0, %c0_0] : memref<16x8xi32, #tpu.memory_space<vmem>>, vector<16x8xi32>
    %c0_1 = arith.constant 0 : index
    %c0_2 = arith.constant 0 : index
    %1 = vector.load %arg1[%c0_1, %c0_2] : memref<16x1xi32, #tpu.memory_space<vmem>>, vector<16x1xi32>
    %2 = tpu.iota {dimensions = array<i32: 1>} : vector<16x8xi32>
    %3 = vector.broadcast %1 : vector<16x1xi32> to vector<16x8xi32>
    %4 = arith.cmpi slt, %2, %3 : vector<16x8xi32>
    %c-1_i32 = arith.constant -1 : i32
    %5 = vector.broadcast %c-1_i32 : i32 to vector<16x8xi32>
    %6 = arith.select %4, %0, %5 : vector<16x8xi1>, vector<16x8xi32>
    %7 = tpu.iota {dimensions = array<i32: 1>} : vector<16x64xi32>
    %cst = arith.constant 0.000000e+00 : f32
    %8 = vector.broadcast %cst : f32 to vector<16x64xf32>
    %9 = vector.extract_strided_slice %6 {offsets = [0, 0], sizes = [16, 1], strides = [1, 1]} : vector<16x8xi32> to vector<16x1xi32>
    %10 = vector.broadcast %9 : vector<16x1xi32> to vector<16x64xi32>
    %11 = arith.cmpi eq, %10, %7 : vector<16x64xi32>
    %12 = arith.extui %11 : vector<16x64xi1> to vector<16x64xi32>
    %13 = arith.sitofp %12 : vector<16x64xi32> to vector<16x64xf32>
    %14 = arith.addf %8, %13 : vector<16x64xf32>
    %15 = vector.extract_strided_slice %6 {offsets = [0, 1], sizes = [16, 1], strides = [1, 1]} : vector<16x8xi32> to vector<16x1xi32>
    %16 = vector.broadcast %15 : vector<16x1xi32> to vector<16x64xi32>
    %17 = arith.cmpi eq, %16, %7 : vector<16x64xi32>
    %18 = arith.extui %17 : vector<16x64xi1> to vector<16x64xi32>
    %19 = arith.sitofp %18 : vector<16x64xi32> to vector<16x64xf32>
    %20 = arith.addf %14, %19 : vector<16x64xf32>
    %21 = vector.extract_strided_slice %6 {offsets = [0, 2], sizes = [16, 1], strides = [1, 1]} : vector<16x8xi32> to vector<16x1xi32>
    %22 = vector.broadcast %21 : vector<16x1xi32> to vector<16x64xi32>
    %23 = arith.cmpi eq, %22, %7 : vector<16x64xi32>
    %24 = arith.extui %23 : vector<16x64xi1> to vector<16x64xi32>
    %25 = arith.sitofp %24 : vector<16x64xi32> to vector<16x64xf32>
    %26 = arith.addf %20, %25 : vector<16x64xf32>
    %27 = vector.extract_strided_slice %6 {offsets = [0, 3], sizes = [16, 1], strides = [1, 1]} : vector<16x8xi32> to vector<16x1xi32>
    %28 = vector.broadcast %27 : vector<16x1xi32> to vector<16x64xi32>
    %29 = arith.cmpi eq, %28, %7 : vector<16x64xi32>
    %30 = arith.extui %29 : vector<16x64xi1> to vector<16x64xi32>
    %31 = arith.sitofp %30 : vector<16x64xi32> to vector<16x64xf32>
    %32 = arith.addf %26, %31 : vector<16x64xf32>
    %33 = vector.extract_strided_slice %6 {offsets = [0, 4], sizes = [16, 1], strides = [1, 1]} : vector<16x8xi32> to vector<16x1xi32>
    %34 = vector.broadcast %33 : vector<16x1xi32> to vector<16x64xi32>
    %35 = arith.cmpi eq, %34, %7 : vector<16x64xi32>
    %36 = arith.extui %35 : vector<16x64xi1> to vector<16x64xi32>
    %37 = arith.sitofp %36 : vector<16x64xi32> to vector<16x64xf32>
    %38 = arith.addf %32, %37 : vector<16x64xf32>
    %39 = vector.extract_strided_slice %6 {offsets = [0, 5], sizes = [16, 1], strides = [1, 1]} : vector<16x8xi32> to vector<16x1xi32>
    %40 = vector.broadcast %39 : vector<16x1xi32> to vector<16x64xi32>
    %41 = arith.cmpi eq, %40, %7 : vector<16x64xi32>
    %42 = arith.extui %41 : vector<16x64xi1> to vector<16x64xi32>
    %43 = arith.sitofp %42 : vector<16x64xi32> to vector<16x64xf32>
    %44 = arith.addf %38, %43 : vector<16x64xf32>
    %45 = vector.extract_strided_slice %6 {offsets = [0, 6], sizes = [16, 1], strides = [1, 1]} : vector<16x8xi32> to vector<16x1xi32>
    %46 = vector.broadcast %45 : vector<16x1xi32> to vector<16x64xi32>
    %47 = arith.cmpi eq, %46, %7 : vector<16x64xi32>
    %48 = arith.extui %47 : vector<16x64xi1> to vector<16x64xi32>
    %49 = arith.sitofp %48 : vector<16x64xi32> to vector<16x64xf32>
    %50 = arith.addf %44, %49 : vector<16x64xf32>
    %51 = vector.extract_strided_slice %6 {offsets = [0, 7], sizes = [16, 1], strides = [1, 1]} : vector<16x8xi32> to vector<16x1xi32>
    %52 = vector.broadcast %51 : vector<16x1xi32> to vector<16x64xi32>
    %53 = arith.cmpi eq, %52, %7 : vector<16x64xi32>
    %54 = arith.extui %53 : vector<16x64xi1> to vector<16x64xi32>
    %55 = arith.sitofp %54 : vector<16x64xi32> to vector<16x64xf32>
    %56 = arith.addf %50, %55 : vector<16x64xf32>
    %57 = arith.truncf %56 : vector<16x64xf32> to vector<16x64xbf16>
    %c0_3 = arith.constant 0 : index
    %c0_4 = arith.constant 0 : index
    %58 = vector.load %arg3[%c0_3, %c0_4] : memref<64x32xbf16, #tpu.memory_space<vmem>>, vector<64x32xbf16>
    %cst_5 = arith.constant dense<0.000000e+00> : vector<16x32xf32>
    %59 = tpu.matmul %57, %58, %cst_5 {dimension_numbers = #tpu.dot_dimension_numbers<[1], [0], [0], [1], [0, 0, 1, 1], [], []>} : vector<16x64xbf16>, vector<64x32xbf16>, vector<16x32xf32> -> vector<16x32xf32>
    %60 = arith.sitofp %1 : vector<16x1xi32> to vector<16x1xf32>
    %cst_6 = arith.constant 1.000000e+00 : f32
    %61 = vector.broadcast %cst_6 : f32 to vector<16x1xf32>
    %62 = arith.maximumf %60, %61 : vector<16x1xf32>
    %63 = tpu.reciprocal %62 {approx = true} : vector<16x1xf32> -> vector<16x1xf32>
    %64 = vector.broadcast %63 : vector<16x1xf32> to vector<16x32xf32>
    %65 = arith.mulf %59, %64 : vector<16x32xf32>
    %c0_7 = arith.constant 0 : index
    %c0_8 = arith.constant 0 : index
    %66 = vector.load %arg2[%c0_7, %c0_8] : memref<16x16xf32, #tpu.memory_space<vmem>>, vector<16x16xf32>
    %cst_9 = arith.constant 0.000000e+00 : f32
    %67 = vector.broadcast %cst_9 : f32 to vector<16x16xf32>
    %68 = arith.cmpf ogt, %66, %67 : vector<16x16xf32>
    %cst_10 = arith.constant 0.000000e+00 : f32
    %cst_11 = arith.constant -1.000000e+09 : f32
    %69 = vector.broadcast %cst_10 : f32 to vector<16x16xf32>
    %70 = vector.broadcast %cst_11 : f32 to vector<16x16xf32>
    %71 = arith.select %68, %69, %70 : vector<16x16xi1>, vector<16x16xf32>
    %c0_12 = arith.constant 0 : index
    %c0_13 = arith.constant 0 : index
    %72 = vector.load %arg4[%c0_12, %c0_13] : memref<32x64xbf16, #tpu.memory_space<vmem>>, vector<32x64xbf16>
    %c0_14 = arith.constant 0 : index
    %c0_15 = arith.constant 0 : index
    %73 = vector.load %arg5[%c0_14, %c0_15] : memref<64x4xbf16, #tpu.memory_space<vmem>>, vector<64x4xbf16>
    %74 = arith.truncf %65 : vector<16x32xf32> to vector<16x32xbf16>
    %cst_16 = arith.constant dense<0.000000e+00> : vector<16x64xf32>
    %75 = tpu.matmul %74, %72, %cst_16 {dimension_numbers = #tpu.dot_dimension_numbers<[1], [0], [0], [1], [0, 0, 1, 1], [], []>} : vector<16x32xbf16>, vector<32x64xbf16>, vector<16x64xf32> -> vector<16x64xf32>
    %76 = arith.truncf %75 : vector<16x64xf32> to vector<16x64xbf16>
    %cst_17 = arith.constant dense<0.000000e+00> : vector<16x4xf32>
    %77 = tpu.matmul %76, %73, %cst_17 {dimension_numbers = #tpu.dot_dimension_numbers<[1], [0], [0], [1], [0, 0, 1, 1], [], []>} : vector<16x64xbf16>, vector<64x4xbf16>, vector<16x4xf32> -> vector<16x4xf32>
    %78 = vector.extract_strided_slice %77 {offsets = [0, 2], sizes = [16, 2], strides = [1, 1]} : vector<16x4xf32> to vector<16x2xf32>
    %79 = tpu.transpose %78, [1, 0] : vector<16x2xf32> -> vector<2x16xf32>
    %80 = vector.extract_strided_slice %77 {offsets = [0, 0], sizes = [16, 1], strides = [1, 1]} : vector<16x4xf32> to vector<16x1xf32>
    %81 = vector.extract_strided_slice %79 {offsets = [0, 0], sizes = [1, 16], strides = [1, 1]} : vector<2x16xf32> to vector<1x16xf32>
    %82 = vector.broadcast %80 : vector<16x1xf32> to vector<16x16xf32>
    %83 = vector.broadcast %81 : vector<1x16xf32> to vector<16x16xf32>
    %84 = arith.addf %82, %83 : vector<16x16xf32>
    %85 = vector.extract_strided_slice %77 {offsets = [0, 1], sizes = [16, 1], strides = [1, 1]} : vector<16x4xf32> to vector<16x1xf32>
    %86 = vector.extract_strided_slice %79 {offsets = [1, 0], sizes = [1, 16], strides = [1, 1]} : vector<2x16xf32> to vector<1x16xf32>
    %87 = vector.broadcast %85 : vector<16x1xf32> to vector<16x16xf32>
    %88 = vector.broadcast %86 : vector<1x16xf32> to vector<16x16xf32>
    %89 = arith.addf %87, %88 : vector<16x16xf32>
    %90 = tpu.concatenate %84, %89 in 0 : vector<16x16xf32>, vector<16x16xf32> -> vector<32x16xf32>
    %cst_18 = arith.constant 0.000000e+00 : f32
    %91 = vector.broadcast %cst_18 : f32 to vector<32x16xf32>
    %92 = arith.cmpf ogt, %90, %91 : vector<32x16xf32>
    %cst_19 = arith.constant 2.000000e-01 : f32
    %93 = vector.broadcast %cst_19 : f32 to vector<32x16xf32>
    %94 = arith.mulf %93, %90 : vector<32x16xf32>
    %95 = arith.select %92, %90, %94 : vector<32x16xi1>, vector<32x16xf32>
    %96 = tpu.concatenate %71, %71 in 0 : vector<16x16xf32>, vector<16x16xf32> -> vector<32x16xf32>
    %97 = arith.addf %95, %96 : vector<32x16xf32>
    %cst_20 = arith.constant dense<0xFF800000> : vector<32xf32>
    %98 = vector.multi_reduction <maximumf>, %97, %cst_20 [1] : vector<32x16xf32> to vector<32xf32>
    %99 = vector.shape_cast %98 : vector<32xf32> to vector<32x1xf32>
    %100 = vector.broadcast %99 : vector<32x1xf32> to vector<32x16xf32>
    %101 = arith.subf %97, %100 : vector<32x16xf32>
    %102 = math.exp %101 : vector<32x16xf32>
    %cst_21 = arith.constant dense<0.000000e+00> : vector<32xf32>
    %103 = vector.multi_reduction <add>, %102, %cst_21 [1] : vector<32x16xf32> to vector<32xf32>
    %104 = vector.shape_cast %103 : vector<32xf32> to vector<32x1xf32>
    %105 = tpu.reciprocal %104 {approx = true} : vector<32x1xf32> -> vector<32x1xf32>
    %106 = vector.broadcast %105 : vector<32x1xf32> to vector<32x16xf32>
    %107 = arith.mulf %102, %106 : vector<32x16xf32>
    %108 = arith.truncf %107 : vector<32x16xf32> to vector<32x16xbf16>
    %109 = vector.extract_strided_slice %108 {offsets = [0, 0], sizes = [16, 16], strides = [1, 1]} : vector<32x16xbf16> to vector<16x16xbf16>
    %110 = vector.extract_strided_slice %76 {offsets = [0, 0], sizes = [16, 32], strides = [1, 1]} : vector<16x64xbf16> to vector<16x32xbf16>
    %cst_22 = arith.constant dense<0.000000e+00> : vector<16x32xf32>
    %111 = tpu.matmul %109, %110, %cst_22 {dimension_numbers = #tpu.dot_dimension_numbers<[1], [0], [0], [1], [0, 0, 1, 1], [], []>} : vector<16x16xbf16>, vector<16x32xbf16>, vector<16x32xf32> -> vector<16x32xf32>
    %112 = vector.extract_strided_slice %108 {offsets = [16, 0], sizes = [16, 16], strides = [1, 1]} : vector<32x16xbf16> to vector<16x16xbf16>
    %113 = vector.extract_strided_slice %76 {offsets = [0, 32], sizes = [16, 32], strides = [1, 1]} : vector<16x64xbf16> to vector<16x32xbf16>
    %cst_23 = arith.constant dense<0.000000e+00> : vector<16x32xf32>
    %114 = tpu.matmul %112, %113, %cst_23 {dimension_numbers = #tpu.dot_dimension_numbers<[1], [0], [0], [1], [0, 0, 1, 1], [], []>} : vector<16x16xbf16>, vector<16x32xbf16>, vector<16x32xf32> -> vector<16x32xf32>
    %115 = tpu.concatenate %111, %114 in 1 : vector<16x32xf32>, vector<16x32xf32> -> vector<16x64xf32>
    %cst_24 = arith.constant 0.000000e+00 : f32
    %116 = vector.broadcast %cst_24 : f32 to vector<16x64xf32>
    %117 = arith.cmpf ogt, %115, %116 : vector<16x64xf32>
    %cst_25 = arith.constant 0.000000e+00 : f32
    %118 = vector.broadcast %cst_25 : f32 to vector<16x64xf32>
    %119 = arith.minimumf %115, %118 : vector<16x64xf32>
    %120 = math.exp %119 : vector<16x64xf32>
    %cst_26 = arith.constant 1.000000e+00 : f32
    %121 = vector.broadcast %cst_26 : f32 to vector<16x64xf32>
    %122 = arith.subf %120, %121 : vector<16x64xf32>
    %123 = arith.select %117, %115, %122 : vector<16x64xi1>, vector<16x64xf32>
    %c0_27 = arith.constant 0 : index
    %c0_28 = arith.constant 0 : index
    %124 = vector.load %arg6[%c0_27, %c0_28] : memref<64x128xbf16, #tpu.memory_space<vmem>>, vector<64x128xbf16>
    %c0_29 = arith.constant 0 : index
    %c0_30 = arith.constant 0 : index
    %125 = vector.load %arg7[%c0_29, %c0_30] : memref<128x8xbf16, #tpu.memory_space<vmem>>, vector<128x8xbf16>
    %126 = arith.truncf %123 : vector<16x64xf32> to vector<16x64xbf16>
    %cst_31 = arith.constant dense<0.000000e+00> : vector<16x128xf32>
    %127 = tpu.matmul %126, %124, %cst_31 {dimension_numbers = #tpu.dot_dimension_numbers<[1], [0], [0], [1], [0, 0, 1, 1], [], []>} : vector<16x64xbf16>, vector<64x128xbf16>, vector<16x128xf32> -> vector<16x128xf32>
    %128 = arith.truncf %127 : vector<16x128xf32> to vector<16x128xbf16>
    %cst_32 = arith.constant dense<0.000000e+00> : vector<16x8xf32>
    %129 = tpu.matmul %128, %125, %cst_32 {dimension_numbers = #tpu.dot_dimension_numbers<[1], [0], [0], [1], [0, 0, 1, 1], [], []>} : vector<16x128xbf16>, vector<128x8xbf16>, vector<16x8xf32> -> vector<16x8xf32>
    %130 = vector.extract_strided_slice %129 {offsets = [0, 4], sizes = [16, 4], strides = [1, 1]} : vector<16x8xf32> to vector<16x4xf32>
    %131 = tpu.transpose %130, [1, 0] : vector<16x4xf32> -> vector<4x16xf32>
    %132 = vector.extract_strided_slice %129 {offsets = [0, 0], sizes = [16, 1], strides = [1, 1]} : vector<16x8xf32> to vector<16x1xf32>
    %133 = vector.extract_strided_slice %131 {offsets = [0, 0], sizes = [1, 16], strides = [1, 1]} : vector<4x16xf32> to vector<1x16xf32>
    %134 = vector.broadcast %132 : vector<16x1xf32> to vector<16x16xf32>
    %135 = vector.broadcast %133 : vector<1x16xf32> to vector<16x16xf32>
    %136 = arith.addf %134, %135 : vector<16x16xf32>
    %137 = vector.extract_strided_slice %129 {offsets = [0, 1], sizes = [16, 1], strides = [1, 1]} : vector<16x8xf32> to vector<16x1xf32>
    %138 = vector.extract_strided_slice %131 {offsets = [1, 0], sizes = [1, 16], strides = [1, 1]} : vector<4x16xf32> to vector<1x16xf32>
    %139 = vector.broadcast %137 : vector<16x1xf32> to vector<16x16xf32>
    %140 = vector.broadcast %138 : vector<1x16xf32> to vector<16x16xf32>
    %141 = arith.addf %139, %140 : vector<16x16xf32>
    %142 = vector.extract_strided_slice %129 {offsets = [0, 2], sizes = [16, 1], strides = [1, 1]} : vector<16x8xf32> to vector<16x1xf32>
    %143 = vector.extract_strided_slice %131 {offsets = [2, 0], sizes = [1, 16], strides = [1, 1]} : vector<4x16xf32> to vector<1x16xf32>
    %144 = vector.broadcast %142 : vector<16x1xf32> to vector<16x16xf32>
    %145 = vector.broadcast %143 : vector<1x16xf32> to vector<16x16xf32>
    %146 = arith.addf %144, %145 : vector<16x16xf32>
    %147 = vector.extract_strided_slice %129 {offsets = [0, 3], sizes = [16, 1], strides = [1, 1]} : vector<16x8xf32> to vector<16x1xf32>
    %148 = vector.extract_strided_slice %131 {offsets = [3, 0], sizes = [1, 16], strides = [1, 1]} : vector<4x16xf32> to vector<1x16xf32>
    %149 = vector.broadcast %147 : vector<16x1xf32> to vector<16x16xf32>
    %150 = vector.broadcast %148 : vector<1x16xf32> to vector<16x16xf32>
    %151 = arith.addf %149, %150 : vector<16x16xf32>
    %152 = tpu.concatenate %136, %141, %146, %151 in 0 : vector<16x16xf32>, vector<16x16xf32>, vector<16x16xf32>, vector<16x16xf32> -> vector<64x16xf32>
    %cst_33 = arith.constant 0.000000e+00 : f32
    %153 = vector.broadcast %cst_33 : f32 to vector<64x16xf32>
    %154 = arith.cmpf ogt, %152, %153 : vector<64x16xf32>
    %cst_34 = arith.constant 2.000000e-01 : f32
    %155 = vector.broadcast %cst_34 : f32 to vector<64x16xf32>
    %156 = arith.mulf %155, %152 : vector<64x16xf32>
    %157 = arith.select %154, %152, %156 : vector<64x16xi1>, vector<64x16xf32>
    %158 = tpu.concatenate %71, %71, %71, %71 in 0 : vector<16x16xf32>, vector<16x16xf32>, vector<16x16xf32>, vector<16x16xf32> -> vector<64x16xf32>
    %159 = arith.addf %157, %158 : vector<64x16xf32>
    %cst_35 = arith.constant dense<0xFF800000> : vector<64xf32>
    %160 = vector.multi_reduction <maximumf>, %159, %cst_35 [1] : vector<64x16xf32> to vector<64xf32>
    %161 = vector.shape_cast %160 : vector<64xf32> to vector<64x1xf32>
    %162 = vector.broadcast %161 : vector<64x1xf32> to vector<64x16xf32>
    %163 = arith.subf %159, %162 : vector<64x16xf32>
    %164 = math.exp %163 : vector<64x16xf32>
    %cst_36 = arith.constant dense<0.000000e+00> : vector<64xf32>
    %165 = vector.multi_reduction <add>, %164, %cst_36 [1] : vector<64x16xf32> to vector<64xf32>
    %166 = vector.shape_cast %165 : vector<64xf32> to vector<64x1xf32>
    %167 = tpu.reciprocal %166 {approx = true} : vector<64x1xf32> -> vector<64x1xf32>
    %168 = vector.broadcast %167 : vector<64x1xf32> to vector<64x16xf32>
    %169 = arith.mulf %164, %168 : vector<64x16xf32>
    %170 = arith.truncf %169 : vector<64x16xf32> to vector<64x16xbf16>
    %171 = vector.extract_strided_slice %170 {offsets = [0, 0], sizes = [16, 16], strides = [1, 1]} : vector<64x16xbf16> to vector<16x16xbf16>
    %172 = vector.extract_strided_slice %128 {offsets = [0, 0], sizes = [16, 32], strides = [1, 1]} : vector<16x128xbf16> to vector<16x32xbf16>
    %cst_37 = arith.constant dense<0.000000e+00> : vector<16x32xf32>
    %173 = tpu.matmul %171, %172, %cst_37 {dimension_numbers = #tpu.dot_dimension_numbers<[1], [0], [0], [1], [0, 0, 1, 1], [], []>} : vector<16x16xbf16>, vector<16x32xbf16>, vector<16x32xf32> -> vector<16x32xf32>
    %174 = vector.extract_strided_slice %170 {offsets = [16, 0], sizes = [16, 16], strides = [1, 1]} : vector<64x16xbf16> to vector<16x16xbf16>
    %175 = vector.extract_strided_slice %128 {offsets = [0, 32], sizes = [16, 32], strides = [1, 1]} : vector<16x128xbf16> to vector<16x32xbf16>
    %cst_38 = arith.constant dense<0.000000e+00> : vector<16x32xf32>
    %176 = tpu.matmul %174, %175, %cst_38 {dimension_numbers = #tpu.dot_dimension_numbers<[1], [0], [0], [1], [0, 0, 1, 1], [], []>} : vector<16x16xbf16>, vector<16x32xbf16>, vector<16x32xf32> -> vector<16x32xf32>
    %177 = vector.extract_strided_slice %170 {offsets = [32, 0], sizes = [16, 16], strides = [1, 1]} : vector<64x16xbf16> to vector<16x16xbf16>
    %178 = vector.extract_strided_slice %128 {offsets = [0, 64], sizes = [16, 32], strides = [1, 1]} : vector<16x128xbf16> to vector<16x32xbf16>
    %cst_39 = arith.constant dense<0.000000e+00> : vector<16x32xf32>
    %179 = tpu.matmul %177, %178, %cst_39 {dimension_numbers = #tpu.dot_dimension_numbers<[1], [0], [0], [1], [0, 0, 1, 1], [], []>} : vector<16x16xbf16>, vector<16x32xbf16>, vector<16x32xf32> -> vector<16x32xf32>
    %180 = vector.extract_strided_slice %170 {offsets = [48, 0], sizes = [16, 16], strides = [1, 1]} : vector<64x16xbf16> to vector<16x16xbf16>
    %181 = vector.extract_strided_slice %128 {offsets = [0, 96], sizes = [16, 32], strides = [1, 1]} : vector<16x128xbf16> to vector<16x32xbf16>
    %cst_40 = arith.constant dense<0.000000e+00> : vector<16x32xf32>
    %182 = tpu.matmul %180, %181, %cst_40 {dimension_numbers = #tpu.dot_dimension_numbers<[1], [0], [0], [1], [0, 0, 1, 1], [], []>} : vector<16x16xbf16>, vector<16x32xbf16>, vector<16x32xf32> -> vector<16x32xf32>
    %183 = tpu.concatenate %173, %176, %179, %182 in 1 : vector<16x32xf32>, vector<16x32xf32>, vector<16x32xf32>, vector<16x32xf32> -> vector<16x128xf32>
    %c0_41 = arith.constant 0 : index
    %c0_42 = arith.constant 0 : index
    %184 = vector.load %arg8[%c0_41, %c0_42] : memref<2x1xi32, #tpu.memory_space<vmem>>, vector<2x1xi32>
    %c0_43 = arith.constant 0 : index
    %c0_44 = arith.constant 0 : index
    %185 = vector.load %arg9[%c0_43, %c0_44] : memref<2x1xi32, #tpu.memory_space<vmem>>, vector<2x1xi32>
    %186 = tpu.iota {dimensions = array<i32: 1>} : vector<2x16xi32>
    %187 = vector.broadcast %184 : vector<2x1xi32> to vector<2x16xi32>
    %188 = arith.cmpi eq, %186, %187 : vector<2x16xi32>
    %189 = arith.extui %188 : vector<2x16xi1> to vector<2x16xi32>
    %190 = arith.sitofp %189 : vector<2x16xi32> to vector<2x16xf32>
    %191 = arith.truncf %190 : vector<2x16xf32> to vector<2x16xbf16>
    %192 = arith.truncf %183 : vector<16x128xf32> to vector<16x128xbf16>
    %cst_45 = arith.constant dense<0.000000e+00> : vector<2x128xf32>
    %193 = tpu.matmul %191, %192, %cst_45 {dimension_numbers = #tpu.dot_dimension_numbers<[1], [0], [0], [1], [0, 0, 1, 1], [], []>} : vector<2x16xbf16>, vector<16x128xbf16>, vector<2x128xf32> -> vector<2x128xf32>
    %cst_46 = arith.constant 0.000000e+00 : f32
    %194 = vector.broadcast %cst_46 : f32 to vector<2x32xf32>
    %c0_i32 = arith.constant 0 : i32
    %195 = vector.broadcast %c0_i32 : i32 to vector<2x1xi32>
    %196 = arith.cmpi eq, %185, %195 : vector<2x1xi32>
    %197 = arith.extui %196 : vector<2x1xi1> to vector<2x1xi32>
    %198 = arith.sitofp %197 : vector<2x1xi32> to vector<2x1xf32>
    %199 = vector.extract_strided_slice %193 {offsets = [0, 0], sizes = [2, 32], strides = [1, 1]} : vector<2x128xf32> to vector<2x32xf32>
    %200 = vector.broadcast %198 : vector<2x1xf32> to vector<2x32xf32>
    %201 = arith.mulf %200, %199 : vector<2x32xf32>
    %202 = arith.addf %194, %201 : vector<2x32xf32>
    %c1_i32 = arith.constant 1 : i32
    %203 = vector.broadcast %c1_i32 : i32 to vector<2x1xi32>
    %204 = arith.cmpi eq, %185, %203 : vector<2x1xi32>
    %205 = arith.extui %204 : vector<2x1xi1> to vector<2x1xi32>
    %206 = arith.sitofp %205 : vector<2x1xi32> to vector<2x1xf32>
    %207 = vector.extract_strided_slice %193 {offsets = [0, 32], sizes = [2, 32], strides = [1, 1]} : vector<2x128xf32> to vector<2x32xf32>
    %208 = vector.broadcast %206 : vector<2x1xf32> to vector<2x32xf32>
    %209 = arith.mulf %208, %207 : vector<2x32xf32>
    %210 = arith.addf %202, %209 : vector<2x32xf32>
    %c2_i32 = arith.constant 2 : i32
    %211 = vector.broadcast %c2_i32 : i32 to vector<2x1xi32>
    %212 = arith.cmpi eq, %185, %211 : vector<2x1xi32>
    %213 = arith.extui %212 : vector<2x1xi1> to vector<2x1xi32>
    %214 = arith.sitofp %213 : vector<2x1xi32> to vector<2x1xf32>
    %215 = vector.extract_strided_slice %193 {offsets = [0, 64], sizes = [2, 32], strides = [1, 1]} : vector<2x128xf32> to vector<2x32xf32>
    %216 = vector.broadcast %214 : vector<2x1xf32> to vector<2x32xf32>
    %217 = arith.mulf %216, %215 : vector<2x32xf32>
    %218 = arith.addf %210, %217 : vector<2x32xf32>
    %c3_i32 = arith.constant 3 : i32
    %219 = vector.broadcast %c3_i32 : i32 to vector<2x1xi32>
    %220 = arith.cmpi eq, %185, %219 : vector<2x1xi32>
    %221 = arith.extui %220 : vector<2x1xi1> to vector<2x1xi32>
    %222 = arith.sitofp %221 : vector<2x1xi32> to vector<2x1xf32>
    %223 = vector.extract_strided_slice %193 {offsets = [0, 96], sizes = [2, 32], strides = [1, 1]} : vector<2x128xf32> to vector<2x32xf32>
    %224 = vector.broadcast %222 : vector<2x1xf32> to vector<2x32xf32>
    %225 = arith.mulf %224, %223 : vector<2x32xf32>
    %226 = arith.addf %218, %225 : vector<2x32xf32>
    %c0_47 = arith.constant 0 : index
    %c0_48 = arith.constant 0 : index
    %227 = vector.load %arg11[%c0_47, %c0_48] : memref<32x128xbf16, #tpu.memory_space<vmem>>, vector<32x128xbf16>
    %c0_49 = arith.constant 0 : index
    %c0_50 = arith.constant 0 : index
    %228 = vector.load %arg13[%c0_49, %c0_50] : memref<32x128xbf16, #tpu.memory_space<vmem>>, vector<32x128xbf16>
    %229 = arith.truncf %226 : vector<2x32xf32> to vector<2x32xbf16>
    %c0_51 = arith.constant 0 : index
    %c0_52 = arith.constant 0 : index
    %230 = vector.load %arg10[%c0_51, %c0_52] : memref<32x128xbf16, #tpu.memory_space<vmem>>, vector<32x128xbf16>
    %cst_53 = arith.constant dense<0.000000e+00> : vector<2x128xf32>
    %231 = tpu.matmul %229, %230, %cst_53 {dimension_numbers = #tpu.dot_dimension_numbers<[1], [0], [0], [1], [0, 0, 1, 1], [], []>} : vector<2x32xbf16>, vector<32x128xbf16>, vector<2x128xf32> -> vector<2x128xf32>
    %c0_54 = arith.constant 0 : index
    %c0_55 = arith.constant 0 : index
    %232 = vector.load %arg12[%c0_54, %c0_55] : memref<1x128xf32, #tpu.memory_space<vmem>>, vector<1x128xf32>
    %233 = vector.broadcast %232 : vector<1x128xf32> to vector<2x128xf32>
    %234 = arith.addf %231, %233 : vector<2x128xf32>
    %cst_56 = arith.constant 0.000000e+00 : f32
    %235 = vector.broadcast %cst_56 : f32 to vector<2x32xf32>
    %cst_57 = arith.constant 0.000000e+00 : f32
    %236 = vector.broadcast %cst_57 : f32 to vector<2x32xf32>
    %237 = arith.truncf %235 : vector<2x32xf32> to vector<2x32xbf16>
    %cst_58 = arith.constant dense<0.000000e+00> : vector<2x128xf32>
    %238 = tpu.matmul %237, %227, %cst_58 {dimension_numbers = #tpu.dot_dimension_numbers<[1], [0], [0], [1], [0, 0, 1, 1], [], []>} : vector<2x32xbf16>, vector<32x128xbf16>, vector<2x128xf32> -> vector<2x128xf32>
    %239 = arith.addf %234, %238 : vector<2x128xf32>
    %240 = vector.extract_strided_slice %239 {offsets = [0, 0], sizes = [2, 32], strides = [1, 1]} : vector<2x128xf32> to vector<2x32xf32>
    %241 = arith.negf %240 : vector<2x32xf32>
    %242 = math.exp %241 : vector<2x32xf32>
    %cst_59 = arith.constant 1.000000e+00 : f32
    %243 = vector.broadcast %cst_59 : f32 to vector<2x32xf32>
    %244 = arith.addf %243, %242 : vector<2x32xf32>
    %245 = arith.divf %243, %244 : vector<2x32xf32>
    %246 = vector.extract_strided_slice %239 {offsets = [0, 32], sizes = [2, 32], strides = [1, 1]} : vector<2x128xf32> to vector<2x32xf32>
    %247 = arith.negf %246 : vector<2x32xf32>
    %248 = math.exp %247 : vector<2x32xf32>
    %cst_60 = arith.constant 1.000000e+00 : f32
    %249 = vector.broadcast %cst_60 : f32 to vector<2x32xf32>
    %250 = arith.addf %249, %248 : vector<2x32xf32>
    %251 = arith.divf %249, %250 : vector<2x32xf32>
    %252 = vector.extract_strided_slice %239 {offsets = [0, 64], sizes = [2, 32], strides = [1, 1]} : vector<2x128xf32> to vector<2x32xf32>
    %253 = math.tanh %252 : vector<2x32xf32>
    %254 = vector.extract_strided_slice %239 {offsets = [0, 96], sizes = [2, 32], strides = [1, 1]} : vector<2x128xf32> to vector<2x32xf32>
    %255 = arith.negf %254 : vector<2x32xf32>
    %256 = math.exp %255 : vector<2x32xf32>
    %cst_61 = arith.constant 1.000000e+00 : f32
    %257 = vector.broadcast %cst_61 : f32 to vector<2x32xf32>
    %258 = arith.addf %257, %256 : vector<2x32xf32>
    %259 = arith.divf %257, %258 : vector<2x32xf32>
    %260 = arith.mulf %251, %236 : vector<2x32xf32>
    %261 = arith.mulf %245, %253 : vector<2x32xf32>
    %262 = arith.addf %260, %261 : vector<2x32xf32>
    %263 = math.tanh %262 : vector<2x32xf32>
    %264 = arith.mulf %259, %263 : vector<2x32xf32>
    %265 = arith.truncf %264 : vector<2x32xf32> to vector<2x32xbf16>
    %cst_62 = arith.constant dense<0.000000e+00> : vector<2x128xf32>
    %266 = tpu.matmul %265, %228, %cst_62 {dimension_numbers = #tpu.dot_dimension_numbers<[1], [0], [0], [1], [0, 0, 1, 1], [], []>} : vector<2x32xbf16>, vector<32x128xbf16>, vector<2x128xf32> -> vector<2x128xf32>
    %267 = arith.truncf %264 : vector<2x32xf32> to vector<2x32xbf16>
    %cst_63 = arith.constant dense<0.000000e+00> : vector<2x128xf32>
    %268 = tpu.matmul %267, %227, %cst_63 {dimension_numbers = #tpu.dot_dimension_numbers<[1], [0], [0], [1], [0, 0, 1, 1], [], []>} : vector<2x32xbf16>, vector<32x128xbf16>, vector<2x128xf32> -> vector<2x128xf32>
    %269 = arith.addf %234, %268 : vector<2x128xf32>
    %270 = vector.extract_strided_slice %269 {offsets = [0, 0], sizes = [2, 32], strides = [1, 1]} : vector<2x128xf32> to vector<2x32xf32>
    %271 = arith.negf %270 : vector<2x32xf32>
    %272 = math.exp %271 : vector<2x32xf32>
    %cst_64 = arith.constant 1.000000e+00 : f32
    %273 = vector.broadcast %cst_64 : f32 to vector<2x32xf32>
    %274 = arith.addf %273, %272 : vector<2x32xf32>
    %275 = arith.divf %273, %274 : vector<2x32xf32>
    %276 = vector.extract_strided_slice %269 {offsets = [0, 32], sizes = [2, 32], strides = [1, 1]} : vector<2x128xf32> to vector<2x32xf32>
    %277 = arith.negf %276 : vector<2x32xf32>
    %278 = math.exp %277 : vector<2x32xf32>
    %cst_65 = arith.constant 1.000000e+00 : f32
    %279 = vector.broadcast %cst_65 : f32 to vector<2x32xf32>
    %280 = arith.addf %279, %278 : vector<2x32xf32>
    %281 = arith.divf %279, %280 : vector<2x32xf32>
    %282 = vector.extract_strided_slice %269 {offsets = [0, 64], sizes = [2, 32], strides = [1, 1]} : vector<2x128xf32> to vector<2x32xf32>
    %283 = math.tanh %282 : vector<2x32xf32>
    %284 = vector.extract_strided_slice %269 {offsets = [0, 96], sizes = [2, 32], strides = [1, 1]} : vector<2x128xf32> to vector<2x32xf32>
    %285 = arith.negf %284 : vector<2x32xf32>
    %286 = math.exp %285 : vector<2x32xf32>
    %cst_66 = arith.constant 1.000000e+00 : f32
    %287 = vector.broadcast %cst_66 : f32 to vector<2x32xf32>
    %288 = arith.addf %287, %286 : vector<2x32xf32>
    %289 = arith.divf %287, %288 : vector<2x32xf32>
    %290 = arith.mulf %281, %262 : vector<2x32xf32>
    %291 = arith.mulf %275, %283 : vector<2x32xf32>
    %292 = arith.addf %290, %291 : vector<2x32xf32>
    %293 = math.tanh %292 : vector<2x32xf32>
    %294 = arith.mulf %289, %293 : vector<2x32xf32>
    %295 = arith.truncf %294 : vector<2x32xf32> to vector<2x32xbf16>
    %cst_67 = arith.constant dense<0.000000e+00> : vector<2x128xf32>
    %296 = tpu.matmul %295, %228, %cst_67 {dimension_numbers = #tpu.dot_dimension_numbers<[1], [0], [0], [1], [0, 0, 1, 1], [], []>} : vector<2x32xbf16>, vector<32x128xbf16>, vector<2x128xf32> -> vector<2x128xf32>
    %297 = arith.truncf %294 : vector<2x32xf32> to vector<2x32xbf16>
    %cst_68 = arith.constant dense<0.000000e+00> : vector<2x128xf32>
    %298 = tpu.matmul %297, %227, %cst_68 {dimension_numbers = #tpu.dot_dimension_numbers<[1], [0], [0], [1], [0, 0, 1, 1], [], []>} : vector<2x32xbf16>, vector<32x128xbf16>, vector<2x128xf32> -> vector<2x128xf32>
    %299 = arith.addf %234, %298 : vector<2x128xf32>
    %300 = vector.extract_strided_slice %299 {offsets = [0, 0], sizes = [2, 32], strides = [1, 1]} : vector<2x128xf32> to vector<2x32xf32>
    %301 = arith.negf %300 : vector<2x32xf32>
    %302 = math.exp %301 : vector<2x32xf32>
    %cst_69 = arith.constant 1.000000e+00 : f32
    %303 = vector.broadcast %cst_69 : f32 to vector<2x32xf32>
    %304 = arith.addf %303, %302 : vector<2x32xf32>
    %305 = arith.divf %303, %304 : vector<2x32xf32>
    %306 = vector.extract_strided_slice %299 {offsets = [0, 32], sizes = [2, 32], strides = [1, 1]} : vector<2x128xf32> to vector<2x32xf32>
    %307 = arith.negf %306 : vector<2x32xf32>
    %308 = math.exp %307 : vector<2x32xf32>
    %cst_70 = arith.constant 1.000000e+00 : f32
    %309 = vector.broadcast %cst_70 : f32 to vector<2x32xf32>
    %310 = arith.addf %309, %308 : vector<2x32xf32>
    %311 = arith.divf %309, %310 : vector<2x32xf32>
    %312 = vector.extract_strided_slice %299 {offsets = [0, 64], sizes = [2, 32], strides = [1, 1]} : vector<2x128xf32> to vector<2x32xf32>
    %313 = math.tanh %312 : vector<2x32xf32>
    %314 = vector.extract_strided_slice %299 {offsets = [0, 96], sizes = [2, 32], strides = [1, 1]} : vector<2x128xf32> to vector<2x32xf32>
    %315 = arith.negf %314 : vector<2x32xf32>
    %316 = math.exp %315 : vector<2x32xf32>
    %cst_71 = arith.constant 1.000000e+00 : f32
    %317 = vector.broadcast %cst_71 : f32 to vector<2x32xf32>
    %318 = arith.addf %317, %316 : vector<2x32xf32>
    %319 = arith.divf %317, %318 : vector<2x32xf32>
    %320 = arith.mulf %311, %292 : vector<2x32xf32>
    %321 = arith.mulf %305, %313 : vector<2x32xf32>
    %322 = arith.addf %320, %321 : vector<2x32xf32>
    %323 = math.tanh %322 : vector<2x32xf32>
    %324 = arith.mulf %319, %323 : vector<2x32xf32>
    %325 = arith.truncf %324 : vector<2x32xf32> to vector<2x32xbf16>
    %cst_72 = arith.constant dense<0.000000e+00> : vector<2x128xf32>
    %326 = tpu.matmul %325, %228, %cst_72 {dimension_numbers = #tpu.dot_dimension_numbers<[1], [0], [0], [1], [0, 0, 1, 1], [], []>} : vector<2x32xbf16>, vector<32x128xbf16>, vector<2x128xf32> -> vector<2x128xf32>
    %327 = arith.truncf %324 : vector<2x32xf32> to vector<2x32xbf16>
    %cst_73 = arith.constant dense<0.000000e+00> : vector<2x128xf32>
    %328 = tpu.matmul %327, %227, %cst_73 {dimension_numbers = #tpu.dot_dimension_numbers<[1], [0], [0], [1], [0, 0, 1, 1], [], []>} : vector<2x32xbf16>, vector<32x128xbf16>, vector<2x128xf32> -> vector<2x128xf32>
    %329 = arith.addf %234, %328 : vector<2x128xf32>
    %330 = vector.extract_strided_slice %329 {offsets = [0, 0], sizes = [2, 32], strides = [1, 1]} : vector<2x128xf32> to vector<2x32xf32>
    %331 = arith.negf %330 : vector<2x32xf32>
    %332 = math.exp %331 : vector<2x32xf32>
    %cst_74 = arith.constant 1.000000e+00 : f32
    %333 = vector.broadcast %cst_74 : f32 to vector<2x32xf32>
    %334 = arith.addf %333, %332 : vector<2x32xf32>
    %335 = arith.divf %333, %334 : vector<2x32xf32>
    %336 = vector.extract_strided_slice %329 {offsets = [0, 32], sizes = [2, 32], strides = [1, 1]} : vector<2x128xf32> to vector<2x32xf32>
    %337 = arith.negf %336 : vector<2x32xf32>
    %338 = math.exp %337 : vector<2x32xf32>
    %cst_75 = arith.constant 1.000000e+00 : f32
    %339 = vector.broadcast %cst_75 : f32 to vector<2x32xf32>
    %340 = arith.addf %339, %338 : vector<2x32xf32>
    %341 = arith.divf %339, %340 : vector<2x32xf32>
    %342 = vector.extract_strided_slice %329 {offsets = [0, 64], sizes = [2, 32], strides = [1, 1]} : vector<2x128xf32> to vector<2x32xf32>
    %343 = math.tanh %342 : vector<2x32xf32>
    %344 = vector.extract_strided_slice %329 {offsets = [0, 96], sizes = [2, 32], strides = [1, 1]} : vector<2x128xf32> to vector<2x32xf32>
    %345 = arith.negf %344 : vector<2x32xf32>
    %346 = math.exp %345 : vector<2x32xf32>
    %cst_76 = arith.constant 1.000000e+00 : f32
    %347 = vector.broadcast %cst_76 : f32 to vector<2x32xf32>
    %348 = arith.addf %347, %346 : vector<2x32xf32>
    %349 = arith.divf %347, %348 : vector<2x32xf32>
    %350 = arith.mulf %341, %322 : vector<2x32xf32>
    %351 = arith.mulf %335, %343 : vector<2x32xf32>
    %352 = arith.addf %350, %351 : vector<2x32xf32>
    %353 = math.tanh %352 : vector<2x32xf32>
    %354 = arith.mulf %349, %353 : vector<2x32xf32>
    %355 = arith.truncf %354 : vector<2x32xf32> to vector<2x32xbf16>
    %cst_77 = arith.constant dense<0.000000e+00> : vector<2x128xf32>
    %356 = tpu.matmul %355, %228, %cst_77 {dimension_numbers = #tpu.dot_dimension_numbers<[1], [0], [0], [1], [0, 0, 1, 1], [], []>} : vector<2x32xbf16>, vector<32x128xbf16>, vector<2x128xf32> -> vector<2x128xf32>
    %357 = arith.truncf %354 : vector<2x32xf32> to vector<2x32xbf16>
    %cst_78 = arith.constant dense<0.000000e+00> : vector<2x128xf32>
    %358 = tpu.matmul %357, %227, %cst_78 {dimension_numbers = #tpu.dot_dimension_numbers<[1], [0], [0], [1], [0, 0, 1, 1], [], []>} : vector<2x32xbf16>, vector<32x128xbf16>, vector<2x128xf32> -> vector<2x128xf32>
    %359 = arith.addf %234, %358 : vector<2x128xf32>
    %360 = vector.extract_strided_slice %359 {offsets = [0, 0], sizes = [2, 32], strides = [1, 1]} : vector<2x128xf32> to vector<2x32xf32>
    %361 = arith.negf %360 : vector<2x32xf32>
    %362 = math.exp %361 : vector<2x32xf32>
    %cst_79 = arith.constant 1.000000e+00 : f32
    %363 = vector.broadcast %cst_79 : f32 to vector<2x32xf32>
    %364 = arith.addf %363, %362 : vector<2x32xf32>
    %365 = arith.divf %363, %364 : vector<2x32xf32>
    %366 = vector.extract_strided_slice %359 {offsets = [0, 32], sizes = [2, 32], strides = [1, 1]} : vector<2x128xf32> to vector<2x32xf32>
    %367 = arith.negf %366 : vector<2x32xf32>
    %368 = math.exp %367 : vector<2x32xf32>
    %cst_80 = arith.constant 1.000000e+00 : f32
    %369 = vector.broadcast %cst_80 : f32 to vector<2x32xf32>
    %370 = arith.addf %369, %368 : vector<2x32xf32>
    %371 = arith.divf %369, %370 : vector<2x32xf32>
    %372 = vector.extract_strided_slice %359 {offsets = [0, 64], sizes = [2, 32], strides = [1, 1]} : vector<2x128xf32> to vector<2x32xf32>
    %373 = math.tanh %372 : vector<2x32xf32>
    %374 = vector.extract_strided_slice %359 {offsets = [0, 96], sizes = [2, 32], strides = [1, 1]} : vector<2x128xf32> to vector<2x32xf32>
    %375 = arith.negf %374 : vector<2x32xf32>
    %376 = math.exp %375 : vector<2x32xf32>
    %cst_81 = arith.constant 1.000000e+00 : f32
    %377 = vector.broadcast %cst_81 : f32 to vector<2x32xf32>
    %378 = arith.addf %377, %376 : vector<2x32xf32>
    %379 = arith.divf %377, %378 : vector<2x32xf32>
    %380 = arith.mulf %371, %352 : vector<2x32xf32>
    %381 = arith.mulf %365, %373 : vector<2x32xf32>
    %382 = arith.addf %380, %381 : vector<2x32xf32>
    %383 = math.tanh %382 : vector<2x32xf32>
    %384 = arith.mulf %379, %383 : vector<2x32xf32>
    %385 = arith.truncf %384 : vector<2x32xf32> to vector<2x32xbf16>
    %cst_82 = arith.constant dense<0.000000e+00> : vector<2x128xf32>
    %386 = tpu.matmul %385, %228, %cst_82 {dimension_numbers = #tpu.dot_dimension_numbers<[1], [0], [0], [1], [0, 0, 1, 1], [], []>} : vector<2x32xbf16>, vector<32x128xbf16>, vector<2x128xf32> -> vector<2x128xf32>
    %387 = vector.shape_cast %266 : vector<2x128xf32> to vector<2x1x128xf32>
    %388 = vector.shape_cast %296 : vector<2x128xf32> to vector<2x1x128xf32>
    %389 = vector.shape_cast %326 : vector<2x128xf32> to vector<2x1x128xf32>
    %390 = vector.shape_cast %356 : vector<2x128xf32> to vector<2x1x128xf32>
    %391 = vector.shape_cast %386 : vector<2x128xf32> to vector<2x1x128xf32>
    %392 = tpu.concatenate %387, %388, %389, %390, %391 in 1 : vector<2x1x128xf32>, vector<2x1x128xf32>, vector<2x1x128xf32>, vector<2x1x128xf32>, vector<2x1x128xf32> -> vector<2x5x128xf32>
    %c0_83 = arith.constant 0 : index
    %c0_84 = arith.constant 0 : index
    %393 = vector.load %arg14[%c0_83, %c0_84] : memref<1x128xf32, #tpu.memory_space<vmem>>, vector<1x128xf32>
    %394 = vector.shape_cast %393 : vector<1x128xf32> to vector<1x1x128xf32>
    %395 = vector.broadcast %394 : vector<1x1x128xf32> to vector<2x5x128xf32>
    %396 = arith.addf %392, %395 : vector<2x5x128xf32>
    %c0_85 = arith.constant 0 : index
    %c0_86 = arith.constant 0 : index
    %c0_87 = arith.constant 0 : index
    %397 = vector.load %arg15[%c0_85, %c0_86, %c0_87] : memref<2x5x128xf32, #tpu.memory_space<vmem>>, vector<2x5x128xf32>
    tpu.vector_store %arg15[%c0_85, %c0_86, %c0_87], %396 {strides = array<i32>} : memref<2x5x128xf32, #tpu.memory_space<vmem>>, vector<2x5x128xf32>,
    return
  }
}

</mosaic_0001>

<llo_original>
// kernel: tpu_custom_call.1
$region0: #{tpu_custom_call.1}
  #allocation0 [shape = 'u32[]', space=smem, size = 0x4, offset = 0x4, fixed_abs, tag = 'smem constant byte address 0x4 - core index']
  #allocation1 [shape = 'u32[72,128]{1,0:T(1,128)}', space=vmem, size = 0x9000, scoped, tag = 'internal scratch']
  %s0 = inlined_call_operand.vmem [shape: s32[16,8], index: 0, kind: input, shape index: {}]
  %s1 = inlined_call_operand.vmem [shape: s32[16,1], index: 1, kind: input, shape index: {}]
  %s2 = inlined_call_operand.vmem [shape: f32[16,16], index: 2, kind: input, shape index: {}]
  %s3 = inlined_call_operand.vmem [shape: bf16[64,32], index: 3, kind: input, shape index: {}]
  %s4 = inlined_call_operand.vmem [shape: bf16[32,64], index: 4, kind: input, shape index: {}]
  %s5 = inlined_call_operand.vmem [shape: bf16[64,4], index: 5, kind: input, shape index: {}]
  %s6 = inlined_call_operand.vmem [shape: bf16[64,128], index: 6, kind: input, shape index: {}]
  %s7 = inlined_call_operand.vmem [shape: bf16[128,8], index: 7, kind: input, shape index: {}]
  %s8 = inlined_call_operand.vmem [shape: s32[2,1], index: 8, kind: input, shape index: {}]
  %s9 = inlined_call_operand.vmem [shape: s32[2,1], index: 9, kind: input, shape index: {}]
  %s10 = inlined_call_operand.vmem [shape: bf16[32,128], index: 10, kind: input, shape index: {}]
  %s11 = inlined_call_operand.vmem [shape: bf16[32,128], index: 11, kind: input, shape index: {}]
  %s12 = inlined_call_operand.vmem [shape: f32[1,128], index: 12, kind: input, shape index: {}]
  %s13 = inlined_call_operand.vmem [shape: bf16[32,128], index: 13, kind: input, shape index: {}]
  %s14 = inlined_call_operand.vmem [shape: f32[1,128], index: 14, kind: input, shape index: {}]
  %s15 = inlined_call_operand.vmem [shape: f32[2,5,128], index: 15, kind: output, shape index: {}]
  %s16 = sld [smem:[#allocation0]]
  $region70: #{tpu_custom_call.1} parent=0
    _
  %s18 = ssub.s32 1, %s16
  %s19 = scalar_select 0, %s18, %s16
  // Predicated region
  $region2: #{tpu_custom_call.1} parent=0 // pred_check
    _
  $region3: #{tpu_custom_call.1} parent=0 // pred_check_branch
    %21 = sbr.rel (0) target = $region5
  $region4: #{tpu_custom_call.1} parent=0 // pred_region
    _
  $region5: #{tpu_custom_call.1} parent=0 // pred_fallthru
    _
  // Predicated region
  $region6: #{tpu_custom_call.1} parent=0 // pred_check
    _
  $region7: #{tpu_custom_call.1} parent=0 // pred_check_branch
    %23 = sbr.rel (0) target = $region9
  $region8: #{tpu_custom_call.1} parent=0 // pred_region
    _
  $region9: #{tpu_custom_call.1} parent=0 // pred_fallthru
    _
  // Predicated region
  $region10: #{tpu_custom_call.1} parent=0 // pred_check
    _
  $region11: #{tpu_custom_call.1} parent=0 // pred_check_branch
    %25 = sbr.rel (0) target = $region13
  $region12: #{tpu_custom_call.1} parent=0 // pred_region
    _
  $region13: #{tpu_custom_call.1} parent=0 // pred_fallthru
    _
  // Predicated region
  $region14: #{tpu_custom_call.1} parent=0 // pred_check
    _
  $region15: #{tpu_custom_call.1} parent=0 // pred_check_branch
    %27 = sbr.rel (0) target = $region17
  $region16: #{tpu_custom_call.1} parent=0 // pred_region
    _
  $region17: #{tpu_custom_call.1} parent=0 // pred_fallthru
    _
  // Predicated region
  $region18: #{tpu_custom_call.1} parent=0 // pred_check
    _
  $region19: #{tpu_custom_call.1} parent=0 // pred_check_branch
    %29 = sbr.rel (0) target = $region21
  $region20: #{tpu_custom_call.1} parent=0 // pred_region
    _
  $region21: #{tpu_custom_call.1} parent=0 // pred_fallthru
    _
  // Predicated region
  $region22: #{tpu_custom_call.1} parent=0 // pred_check
    _
  $region23: #{tpu_custom_call.1} parent=0 // pred_check_branch
    %31 = sbr.rel (0) target = $region25
  $region24: #{tpu_custom_call.1} parent=0 // pred_region
    _
  $region25: #{tpu_custom_call.1} parent=0 // pred_fallthru
    _
  // Predicated region
  $region26: #{tpu_custom_call.1} parent=0 // pred_check
    _
  $region27: #{tpu_custom_call.1} parent=0 // pred_check_branch
    %33 = sbr.rel (0) target = $region29
  $region28: #{tpu_custom_call.1} parent=0 // pred_region
    _
  $region29: #{tpu_custom_call.1} parent=0 // pred_fallthru
    _
  // Predicated region
  $region30: #{tpu_custom_call.1} parent=0 // pred_check
    _
  $region31: #{tpu_custom_call.1} parent=0 // pred_check_branch
    %35 = sbr.rel (0) target = $region33
  $region32: #{tpu_custom_call.1} parent=0 // pred_region
    _
  $region33: #{tpu_custom_call.1} parent=0 // pred_fallthru
    _
  // Predicated region
  $region34: #{tpu_custom_call.1} parent=0 // pred_check
    _
  $region35: #{tpu_custom_call.1} parent=0 // pred_check_branch
    %37 = sbr.rel (0) target = $region37
  $region36: #{tpu_custom_call.1} parent=0 // pred_region
    _
  $region37: #{tpu_custom_call.1} parent=0 // pred_fallthru
    _
  // Predicated region
  $region38: #{tpu_custom_call.1} parent=0 // pred_check
    _
  $region39: #{tpu_custom_call.1} parent=0 // pred_check_branch
    %39 = sbr.rel (0) target = $region41
  $region40: #{tpu_custom_call.1} parent=0 // pred_region
    _
  $region41: #{tpu_custom_call.1} parent=0 // pred_fallthru
    _
  // Predicated region
  $region42: #{tpu_custom_call.1} parent=0 // pred_check
    _
  $region43: #{tpu_custom_call.1} parent=0 // pred_check_branch
    %41 = sbr.rel (0) target = $region45
  $region44: #{tpu_custom_call.1} parent=0 // pred_region
    _
  $region45: #{tpu_custom_call.1} parent=0 // pred_fallthru
    _
  // Predicated region
  $region46: #{tpu_custom_call.1} parent=0 // pred_check
    _
  $region47: #{tpu_custom_call.1} parent=0 // pred_check_branch
    %43 = sbr.rel (0) target = $region49
  $region48: #{tpu_custom_call.1} parent=0 // pred_region
    _
  $region49: #{tpu_custom_call.1} parent=0 // pred_fallthru
    _
  // Predicated region
  $region50: #{tpu_custom_call.1} parent=0 // pred_check
    _
  $region51: #{tpu_custom_call.1} parent=0 // pred_check_branch
    %45 = sbr.rel (0) target = $region53
  $region52: #{tpu_custom_call.1} parent=0 // pred_region
    _
  $region53: #{tpu_custom_call.1} parent=0 // pred_fallthru
    _
  // Predicated region
  $region54: #{tpu_custom_call.1} parent=0 // pred_check
    _
  $region55: #{tpu_custom_call.1} parent=0 // pred_check_branch
    %47 = sbr.rel (0) target = $region57
  $region56: #{tpu_custom_call.1} parent=0 // pred_region
    _
  $region57: #{tpu_custom_call.1} parent=0 // pred_fallthru
    _
  // Predicated region
  $region58: #{tpu_custom_call.1} parent=0 // pred_check
    _
  $region59: #{tpu_custom_call.1} parent=0 // pred_check_branch
    %49 = sbr.rel (0) target = $region61
  $region60: #{tpu_custom_call.1} parent=0 // pred_region
    _
  $region61: #{tpu_custom_call.1} parent=0 // pred_fallthru
    _
  %v51 = vld [vmem:[%s0] sm:$0xff]
  %v52 = vld [vmem:[%s0 + $0x8] sm:$0xff]
  %v53 = vld [vmem:[%s1] sm:$0xff]
  %v54 = vld [vmem:[%s1 + $0x8] sm:$0xff]
  %v55 = vlaneseq
  %v56 = vand.u32 %v55, 127
  %57 = vset.pattern.permute.xlu0 0
  %58 = vperm.xlu0 %57, %v53
  %v59 = vpop.permute.xlu0 %58
  %60 = vset.pattern.permute.xlu0 0
  %61 = vperm.xlu0 %60, %v54
  %v62 = vpop.permute.xlu0 %61
  %vm63 = vcmp.lt.s32.totalorder %v56, %v59
  %vm64 = vcmp.lt.s32.totalorder %v56, %v62
  %v65 = vsel %vm63, %v51, 4294967295
  %v66 = vsel %vm64, %v52, 4294967295
  %67 = vset.pattern.permute.xlu0 0
  %68 = vperm.xlu0 %67, %v65
  %v69 = vpop.permute.xlu0 %68
  %70 = vset.pattern.permute.xlu0 0
  %71 = vperm.xlu0 %70, %v66
  %v72 = vpop.permute.xlu0 %71
  %vm73 = vcmp.eq.s32.totalorder %v69, %v56
  %vm74 = vcmp.eq.s32.totalorder %v72, %v56
  %v75 = vsel %vm73, 1, 0
  %v76 = vsel %vm74, 1, 0
  %v77 = vcvt.s32.f32 %v75
  %v78 = vcvt.s32.f32 %v76
  %v79 = vadd.f32 %v77, 0.0
  %v80 = vadd.f32 %v78, 0.0
  %81 = vset.pattern.permute.xlu0 1
  %82 = vperm.xlu0 %81, %v65
  %v83 = vpop.permute.xlu0 %82
  %84 = vset.pattern.permute.xlu0 1
  %85 = vperm.xlu0 %84, %v66
  %v86 = vpop.permute.xlu0 %85
  %vm87 = vcmp.eq.s32.totalorder %v83, %v56
  %vm88 = vcmp.eq.s32.totalorder %v86, %v56
  %v89 = vsel %vm87, 1, 0
  %v90 = vsel %vm88, 1, 0
  %v91 = vcvt.s32.f32 %v89
  %v92 = vcvt.s32.f32 %v90
  %v93 = vadd.f32 %v79, %v91
  %v94 = vadd.f32 %v80, %v92
  %95 = vset.pattern.permute.xlu0 2
  %96 = vperm.xlu0 %95, %v65
  %v97 = vpop.permute.xlu0 %96
  %98 = vset.pattern.permute.xlu0 2
  %99 = vperm.xlu0 %98, %v66
  %v100 = vpop.permute.xlu0 %99
  %vm101 = vcmp.eq.s32.totalorder %v97, %v56
  %vm102 = vcmp.eq.s32.totalorder %v100, %v56
  %v103 = vsel %vm101, 1, 0
  %v104 = vsel %vm102, 1, 0
  %v105 = vcvt.s32.f32 %v103
  %v106 = vcvt.s32.f32 %v104
  %v107 = vadd.f32 %v93, %v105
  %v108 = vadd.f32 %v94, %v106
  %109 = vset.pattern.permute.xlu0 3
  %110 = vperm.xlu0 %109, %v65
  %v111 = vpop.permute.xlu0 %110
  %112 = vset.pattern.permute.xlu0 3
  %113 = vperm.xlu0 %112, %v66
  %v114 = vpop.permute.xlu0 %113
  %vm115 = vcmp.eq.s32.totalorder %v111, %v56
  %vm116 = vcmp.eq.s32.totalorder %v114, %v56
  %v117 = vsel %vm115, 1, 0
  %v118 = vsel %vm116, 1, 0
  %v119 = vcvt.s32.f32 %v117
  %v120 = vcvt.s32.f32 %v118
  %v121 = vadd.f32 %v107, %v119
  %v122 = vadd.f32 %v108, %v120
  %123 = vset.pattern.permute.xlu0 4
  %124 = vperm.xlu0 %123, %v65
  %v125 = vpop.permute.xlu0 %124
  %126 = vset.pattern.permute.xlu0 4
  %127 = vperm.xlu0 %126, %v66
  %v128 = vpop.permute.xlu0 %127
  %vm129 = vcmp.eq.s32.totalorder %v125, %v56
  %vm130 = vcmp.eq.s32.totalorder %v128, %v56
  %v131 = vsel %vm129, 1, 0
  %v132 = vsel %vm130, 1, 0
  %v133 = vcvt.s32.f32 %v131
  %v134 = vcvt.s32.f32 %v132
  %v135 = vadd.f32 %v121, %v133
  %v136 = vadd.f32 %v122, %v134
  %137 = vset.pattern.permute.xlu0 5
  %138 = vperm.xlu0 %137, %v65
  %v139 = vpop.permute.xlu0 %138
  %140 = vset.pattern.permute.xlu0 5
  %141 = vperm.xlu0 %140, %v66
  %v142 = vpop.permute.xlu0 %141
  %vm143 = vcmp.eq.s32.totalorder %v139, %v56
  %vm144 = vcmp.eq.s32.totalorder %v142, %v56
  %v145 = vsel %vm143, 1, 0
  %v146 = vsel %vm144, 1, 0
  %v147 = vcvt.s32.f32 %v145
  %v148 = vcvt.s32.f32 %v146
  %v149 = vadd.f32 %v135, %v147
  %v150 = vadd.f32 %v136, %v148
  %151 = vset.pattern.permute.xlu0 6
  %152 = vperm.xlu0 %151, %v65
  %v153 = vpop.permute.xlu0 %152
  %154 = vset.pattern.permute.xlu0 6
  %155 = vperm.xlu0 %154, %v66
  %v156 = vpop.permute.xlu0 %155
  %vm157 = vcmp.eq.s32.totalorder %v153, %v56
  %vm158 = vcmp.eq.s32.totalorder %v156, %v56
  %v159 = vsel %vm157, 1, 0
  %v160 = vsel %vm158, 1, 0
  %v161 = vcvt.s32.f32 %v159
  %v162 = vcvt.s32.f32 %v160
  %v163 = vadd.f32 %v149, %v161
  %v164 = vadd.f32 %v150, %v162
  %165 = vset.pattern.permute.xlu0 7
  %166 = vperm.xlu0 %165, %v65
  %v167 = vpop.permute.xlu0 %166
  %168 = vset.pattern.permute.xlu0 7
  %169 = vperm.xlu0 %168, %v66
  %v170 = vpop.permute.xlu0 %169
  %vm171 = vcmp.eq.s32.totalorder %v167, %v56
  %vm172 = vcmp.eq.s32.totalorder %v170, %v56
  %v173 = vsel %vm171, 1, 0
  %v174 = vsel %vm172, 1, 0
  %v175 = vcvt.s32.f32 %v173
  %v176 = vcvt.s32.f32 %v174
  %v177 = vadd.f32 %v163, %v175
  %v178 = vadd.f32 %v164, %v176
  %v179 = vpack.c.bf16 %v178, %v177
  %v180 = vld [vmem:[%s3] sm:$0xf]
  %v181 = vld [vmem:[%s3 + $0x4] sm:$0xf]
  %v182 = vld [vmem:[%s3 + $0x8] sm:$0xf]
  %v183 = vld [vmem:[%s3 + $0xc] sm:$0xf]
  %v184 = vld [vmem:[%s3 + $0x10] sm:$0xf]
  %v185 = vld [vmem:[%s3 + $0x14] sm:$0xf]
  %v186 = vld [vmem:[%s3 + $0x18] sm:$0xf]
  %v187 = vld [vmem:[%s3 + $0x1c] sm:$0xf]
  %v196 = vunpack.c.l.b16 %v180
  %v197 = vunpack.c.l.b16 %v181
  %v198 = vunpack.c.l.b16 %v182
  %v199 = vunpack.c.l.b16 %v183
  %v200 = vunpack.c.l.b16 %v184
  %v201 = vunpack.c.l.b16 %v185
  %v202 = vunpack.c.l.b16 %v186
  %v203 = vunpack.c.l.b16 %v187
  %v204 = vpack.c.b16 %v197, %v196
  %v205 = vpack.c.b16 %v199, %v198
  %v206 = vpack.c.b16 %v201, %v200
  %v207 = vpack.c.b16 %v203, %v202
  %vm212 = vcmask 523264
  %v214 = vsel %vm212, %v179, 0
  %216 = vmatpush.bf16.msra.mxu0 0
  %217 = vmatpush.bf16.msra.mxu0 0
  %218 = vmatpush.bf16.msra.mxu0 0
  %219 = vmatpush.bf16.msra.mxu0 0
  %220 = vmatpush.bf16.msra.mxu0 %v207
  %221 = vmatpush.bf16.msra.mxu0 %v206
  %222 = vmatpush.bf16.msra.mxu0 %v205
  %223 = vmatpush.bf16.msra.mxu0 %v204
  %224 = vmatmul.bf16.gmra.mxu0 %v214
  %v225 = vpop.f32.mrf.mxu0
  %v226 = vadd.f32 0.0, %v225
  %v227 = vpop.f32.mrf.mxu0
  %v228 = vadd.f32 0.0, %v227
  %229 = vdwg.mxu0
  %v230 = vcvt.s32.f32 %v53
  %v231 = vcvt.s32.f32 %v54
  %v232 = vmax.f32 %v230, 1.0
  %v233 = vmax.f32 %v231, 1.0
  %v234 = vrcp.pop %v232
  %v235 = vrcp.pop %v233
  %237 = vset.pattern.permute.xlu0 0
  %238 = vperm.xlu0 %237, %v234
  %v239 = vpop.permute.xlu0 %238
  %242 = vset.pattern.permute.xlu0 0
  %243 = vperm.xlu0 %242, %v235
  %v244 = vpop.permute.xlu0 %243
  %v246 = vmul.f32 %v226, %v239
  %v247 = vmul.f32 %v228, %v244
  %v248 = vld [vmem:[%s2] sm:$0xff]
  %v249 = vld [vmem:[%s2 + $0x8] sm:$0xff]
  %vm250 = vcmp.gt.f32.partialorder %v248, 0.0
  %vm251 = vcmp.gt.f32.partialorder %v249, 0.0
  %v252 = vsel %vm250, 0.0, -1e+09
  %v253 = vsel %vm251, 0.0, -1e+09
  %v254 = vld [vmem:[%s4] sm:$0xf]
  %v255 = vld [vmem:[%s4 + $0x4] sm:$0xf]
  %v256 = vld [vmem:[%s4 + $0x8] sm:$0xf]
  %v257 = vld [vmem:[%s4 + $0xc] sm:$0xf]
  %v258 = vld [vmem:[%s5] sm:$0xf]
  %v259 = vld [vmem:[%s5 + $0x4] sm:$0xf]
  %v260 = vld [vmem:[%s5 + $0x8] sm:$0xf]
  %v261 = vld [vmem:[%s5 + $0xc] sm:$0xf]
  %v262 = vld [vmem:[%s5 + $0x10] sm:$0xf]
  %v263 = vld [vmem:[%s5 + $0x14] sm:$0xf]
  %v264 = vld [vmem:[%s5 + $0x18] sm:$0xf]
  %v265 = vld [vmem:[%s5 + $0x1c] sm:$0xf]
  %v266 = vpack.c.bf16 %v247, %v246
  %v271 = vunpack.c.l.b16 %v254
  %v272 = vunpack.c.l.b16 %v255
  %v273 = vunpack.c.l.b16 %v256
  %v274 = vunpack.c.l.b16 %v257
  %v275 = vpack.c.b16 %v272, %v271
  %v276 = vpack.c.b16 %v274, %v273
  %vm279 = vcmask 261120
  %v281 = vsel %vm279, %v266, 0
  %283 = vmatpush.bf16.msra.mxu0 0
  %284 = vmatpush.bf16.msra.mxu0 0
  %285 = vmatpush.bf16.msra.mxu0 0
  %286 = vmatpush.bf16.msra.mxu0 0
  %287 = vmatpush.bf16.msra.mxu0 0
  %288 = vmatpush.bf16.msra.mxu0 0
  %289 = vmatpush.bf16.msra.mxu0 %v276
  %290 = vmatpush.bf16.msra.mxu0 %v275
  %291 = vmatmul.bf16.gmra.mxu0 %v281
  %v292 = vpop.f32.mrf.mxu0
  %v293 = vadd.f32 0.0, %v292
  %v294 = vpop.f32.mrf.mxu0
  %v295 = vadd.f32 0.0, %v294
  %296 = vdwg.mxu0
  %v297 = vpack.c.bf16 %v293, %v293
  %v298 = vpack.c.bf16 %v295, %v295
  %v301 = vunpack.c.l.b16 %v297
  %v302 = vunpack.c.l.b16 %v298
  %v303 = vpack.c.b16 %v302, %v301
  %v312 = vunpack.c.l.b16 %v258
  %v313 = vunpack.c.l.b16 %v259
  %v314 = vunpack.c.l.b16 %v260
  %v315 = vunpack.c.l.b16 %v261
  %v316 = vunpack.c.l.b16 %v262
  %v317 = vunpack.c.l.b16 %v263
  %v318 = vunpack.c.l.b16 %v264
  %v319 = vunpack.c.l.b16 %v265
  %v320 = vpack.c.b16 %v313, %v312
  %v321 = vpack.c.b16 %v315, %v314
  %v322 = vpack.c.b16 %v317, %v316
  %v323 = vpack.c.b16 %v319, %v318
  %v329 = vsel %vm212, %v303, 0
  %331 = vmatpush.bf16.msra.mxu0 0
  %332 = vmatpush.bf16.msra.mxu0 0
  %333 = vmatpush.bf16.msra.mxu0 0
  %334 = vmatpush.bf16.msra.mxu0 0
  %335 = vmatpush.bf16.msra.mxu0 %v323
  %336 = vmatpush.bf16.msra.mxu0 %v322
  %337 = vmatpush.bf16.msra.mxu0 %v321
  %338 = vmatpush.bf16.msra.mxu0 %v320
  %339 = vmatmul.bf16.gmra.mxu0 %v329
  %v340 = vpop.f32.mrf.mxu0
  %v341 = vadd.f32 0.0, %v340
  %v342 = vpop.f32.mrf.mxu0
  %v343 = vadd.f32 0.0, %v342
  %344 = vdwg.mxu0
  %347 = vrot.lane.b32.xlu0 %v341, 126
  %v348 = vpop.permute.xlu0 %347
  %349 = vrot.lane.b32.xlu0 %v343, 126
  %v350 = vpop.permute.xlu0 %349
  %353 = vxpose.xlu0.b32.start [1/16] %v348, 128
  %354 = vxpose.xlu0.b32.cont [2/16] %v350, 128
  %355 = vxpose.xlu0.b32.cont [3/16] 0.0, 128
  %356 = vxpose.xlu0.b32.cont [4/16] 0.0, 128
  %357 = vxpose.xlu0.b32.cont [5/16] 0.0, 128
  %358 = vxpose.xlu0.b32.cont [6/16] 0.0, 128
  %359 = vxpose.xlu0.b32.cont [7/16] 0.0, 128
  %360 = vxpose.xlu0.b32.cont [8/16] 0.0, 128
  %361 = vxpose.xlu0.b32.cont [9/16] 0.0, 128
  %362 = vxpose.xlu0.b32.cont [10/16] 0.0, 128
  %363 = vxpose.xlu0.b32.cont [11/16] 0.0, 128
  %364 = vxpose.xlu0.b32.cont [12/16] 0.0, 128
  %365 = vxpose.xlu0.b32.cont [13/16] 0.0, 128
  %366 = vxpose.xlu0.b32.cont [14/16] 0.0, 128
  %367 = vxpose.xlu0.b32.cont [15/16] 0.0, 128
  %368 = vxpose.xlu0.b32.end [16/16] 0.0, 128
  %v369 = vpop.trf.xlu0
  %v370 = vpop.trf.xlu0
  %v371 = vpop.trf.xlu0
  %v372 = vpop.trf.xlu0
  %v373 = vpop.trf.xlu0
  %v374 = vpop.trf.xlu0
  %v375 = vpop.trf.xlu0
  %v376 = vpop.trf.xlu0
  %v377 = vpop.trf.xlu0
  %v378 = vpop.trf.xlu0
  %v379 = vpop.trf.xlu0
  %v380 = vpop.trf.xlu0
  %v381 = vpop.trf.xlu0
  %v382 = vpop.trf.xlu0
  %v383 = vpop.trf.xlu0
  %v384 = vpop.trf.xlu0
  %385 = vset.pattern.permute.xlu0 0
  %386 = vperm.xlu0 %385, %v341
  %v387 = vpop.permute.xlu0 %386
  %389 = vset.pattern.permute.xlu0 0
  %390 = vperm.xlu0 %389, %v343
  %v391 = vpop.permute.xlu0 %390
  %v393 = vperm.slane %v369, 0
  %v394 = vadd.f32 %v387, %v393
  %v395 = vadd.f32 %v391, %v393
  %396 = vset.pattern.permute.xlu0 1
  %397 = vperm.xlu0 %396, %v341
  %v398 = vpop.permute.xlu0 %397
  %400 = vset.pattern.permute.xlu0 1
  %401 = vperm.xlu0 %400, %v343
  %v402 = vpop.permute.xlu0 %401
  %v404 = vperm.slane %v369, 1
  %v405 = vadd.f32 %v398, %v404
  %v406 = vadd.f32 %v402, %v404
  %vm407 = vcmp.gt.f32.partialorder %v394, 0.0
  %vm408 = vcmp.gt.f32.partialorder %v395, 0.0
  %vm409 = vcmp.gt.f32.partialorder %v405, 0.0
  %vm410 = vcmp.gt.f32.partialorder %v406, 0.0
  %v411 = vmul.f32 %v394, 0.2
  %v412 = vmul.f32 %v395, 0.2
  %v413 = vmul.f32 %v405, 0.2
  %v414 = vmul.f32 %v406, 0.2
  %v415 = vsel %vm407, %v394, %v411
  %v416 = vsel %vm408, %v395, %v412
  %v417 = vsel %vm409, %v405, %v413
  %v418 = vsel %vm410, %v406, %v414
  %v419 = vadd.f32 %v415, %v252
  %v420 = vadd.f32 %v416, %v253
  %v421 = vadd.f32 %v417, %v252
  %v422 = vadd.f32 %v418, %v253
  %vm423 = vcmask 130048
  %v424 = vsel %vm423, %v419, -inf
  %425 = vmax.xlane.f32.xlu0 %v424
  %v426 = vpop.xlane.xlu0 %425
  %v427 = vsel %vm423, %v420, -inf
  %428 = vmax.xlane.f32.xlu0 %v427
  %v429 = vpop.xlane.xlu0 %428
  %v430 = vsel %vm423, %v421, -inf
  %431 = vmax.xlane.f32.xlu0 %v430
  %v432 = vpop.xlane.xlu0 %431
  %v433 = vsel %vm423, %v422, -inf
  %434 = vmax.xlane.f32.xlu0 %v433
  %v435 = vpop.xlane.xlu0 %434
  %v436 = vsub.f32 %v419, %v426
  %v437 = vsub.f32 %v420, %v429
  %v438 = vsub.f32 %v421, %v432
  %v439 = vsub.f32 %v422, %v435
  %v440 = vmul.f32 %v436, 1.442695
  %v441 = vpow.pop %v440
  %v442 = vmul.f32 %v437, 1.442695
  %v443 = vpow.pop %v442
  %v444 = vmul.f32 %v438, 1.442695
  %v445 = vpow.pop %v444
  %v446 = vmul.f32 %v439, 1.442695
  %v447 = vpow.pop %v446
  %v448 = vsel %vm423, %v441, 0.0
  %449 = vadd.xlane.f32.xlu0 %v448
  %v450 = vpop.xlane.xlu0 %449
  %v451 = vsel %vm423, %v443, 0.0
  %452 = vadd.xlane.f32.xlu0 %v451
  %v453 = vpop.xlane.xlu0 %452
  %v454 = vsel %vm423, %v445, 0.0
  %455 = vadd.xlane.f32.xlu0 %v454
  %v456 = vpop.xlane.xlu0 %455
  %v457 = vsel %vm423, %v447, 0.0
  %458 = vadd.xlane.f32.xlu0 %v457
  %v459 = vpop.xlane.xlu0 %458
  %v460 = vrcp.pop %v450
  %v461 = vrcp.pop %v453
  %v462 = vrcp.pop %v456
  %v463 = vrcp.pop %v459
  %v464 = vmul.f32 %v441, %v460
  %v465 = vmul.f32 %v443, %v461
  %v466 = vmul.f32 %v445, %v462
  %v467 = vmul.f32 %v447, %v463
  %v468 = vpack.c.bf16 %v464, %v464
  %v469 = vpack.c.bf16 %v465, %v465
  %v470 = vpack.c.bf16 %v466, %v466
  %v471 = vpack.c.bf16 %v467, %v467
  %v474 = vunpack.c.l.b16 %v468
  %v475 = vunpack.c.l.b16 %v469
  %v476 = vpack.c.b16 %v475, %v474
  %v479 = vsel %vm423, %v476, 0
  %481 = vmatpush.bf16.msra.mxu0 0
  %482 = vmatpush.bf16.msra.mxu0 0
  %483 = vmatpush.bf16.msra.mxu0 0
  %484 = vmatpush.bf16.msra.mxu0 0
  %485 = vmatpush.bf16.msra.mxu0 0
  %486 = vmatpush.bf16.msra.mxu0 0
  %487 = vmatpush.bf16.msra.mxu0 0
  %488 = vmatpush.bf16.msra.mxu0 %v303
  %489 = vmatmul.bf16.gmra.mxu0 %v479
  %v490 = vpop.f32.mrf.mxu0
  %v491 = vadd.f32 0.0, %v490
  %v492 = vpop.f32.mrf.mxu0
  %v493 = vadd.f32 0.0, %v492
  %494 = vdwg.mxu0
  %v497 = vunpack.c.l.b16 %v470
  %v498 = vunpack.c.l.b16 %v471
  %v499 = vpack.c.b16 %v498, %v497
  %500 = vrot.lane.b32.xlu0 %v303, 96
  %v501 = vpop.permute.xlu0 %500
  %v504 = vsel %vm423, %v499, 0
  %506 = vmatpush.bf16.msra.mxu0 0
  %507 = vmatpush.bf16.msra.mxu0 0
  %508 = vmatpush.bf16.msra.mxu0 0
  %509 = vmatpush.bf16.msra.mxu0 0
  %510 = vmatpush.bf16.msra.mxu0 0
  %511 = vmatpush.bf16.msra.mxu0 0
  %512 = vmatpush.bf16.msra.mxu0 0
  %513 = vmatpush.bf16.msra.mxu0 %v501
  %514 = vmatmul.bf16.gmra.mxu0 %v504
  %v515 = vpop.f32.mrf.mxu0
  %v516 = vadd.f32 0.0, %v515
  %v517 = vpop.f32.mrf.mxu0
  %v518 = vadd.f32 0.0, %v517
  %519 = vdwg.mxu0
  %522 = vrot.lane.b32.xlu0 %v516, 32
  %v523 = vpop.permute.xlu0 %522
  %524 = vrot.lane.b32.xlu0 %v518, 32
  %v525 = vpop.permute.xlu0 %524
  %v528 = vsel %vm279, %v491, %v523
  %v529 = vsel %vm279, %v493, %v525
  %vm530 = vcmp.gt.f32.partialorder %v528, 0.0
  %vm531 = vcmp.gt.f32.partialorder %v529, 0.0
  %v532 = vmin.f32 %v528, 0.0
  %v533 = vmin.f32 %v529, 0.0
  %v534 = vmul.f32 %v532, 1.442695
  %v535 = vpow.pop %v534
  %v536 = vmul.f32 %v533, 1.442695
  %v537 = vpow.pop %v536
  %v538 = vsub.f32 %v535, 1.0
  %v539 = vsub.f32 %v537, 1.0
  %v540 = vsel %vm530, %v528, %v538
  %v541 = vsel %vm531, %v529, %v539
  %v542 = vld [vmem:[%s6] sm:$0xf]
  %v543 = vld [vmem:[%s6 + $0x4] sm:$0xf]
  %v544 = vld [vmem:[%s6 + $0x8] sm:$0xf]
  %v545 = vld [vmem:[%s6 + $0xc] sm:$0xf]
  %v546 = vld [vmem:[%s6 + $0x10] sm:$0xf]
  %v547 = vld [vmem:[%s6 + $0x14] sm:$0xf]
  %v548 = vld [vmem:[%s6 + $0x18] sm:$0xf]
  %v549 = vld [vmem:[%s6 + $0x1c] sm:$0xf]
  %v550 = vld [vmem:[%s7] sm:$0xf]
  %v551 = vld [vmem:[%s7 + $0x4] sm:$0xf]
  %v552 = vld [vmem:[%s7 + $0x8] sm:$0xf]
  %v553 = vld [vmem:[%s7 + $0xc] sm:$0xf]
  %v554 = vld [vmem:[%s7 + $0x10] sm:$0xf]
  %v555 = vld [vmem:[%s7 + $0x14] sm:$0xf]
  %v556 = vld [vmem:[%s7 + $0x18] sm:$0xf]
  %v557 = vld [vmem:[%s7 + $0x1c] sm:$0xf]
  %v558 = vld [vmem:[%s7 + $0x20] sm:$0xf]
  %v559 = vld [vmem:[%s7 + $0x24] sm:$0xf]
  %v560 = vld [vmem:[%s7 + $0x28] sm:$0xf]
  %v561 = vld [vmem:[%s7 + $0x2c] sm:$0xf]
  %v562 = vld [vmem:[%s7 + $0x30] sm:$0xf]
  %v563 = vld [vmem:[%s7 + $0x34] sm:$0xf]
  %v564 = vld [vmem:[%s7 + $0x38] sm:$0xf]
  %v565 = vld [vmem:[%s7 + $0x3c] sm:$0xf]
  %v566 = vpack.c.bf16 %v541, %v540
  %v575 = vunpack.c.l.b16 %v542
  %v576 = vunpack.c.l.b16 %v543
  %v577 = vunpack.c.l.b16 %v544
  %v578 = vunpack.c.l.b16 %v545
  %v579 = vunpack.c.l.b16 %v546
  %v580 = vunpack.c.l.b16 %v547
  %v581 = vunpack.c.l.b16 %v548
  %v582 = vunpack.c.l.b16 %v549
  %v583 = vpack.c.b16 %v576, %v575
  %v584 = vpack.c.b16 %v578, %v577
  %v585 = vpack.c.b16 %v580, %v579
  %v586 = vpack.c.b16 %v582, %v581
  %v592 = vsel %vm212, %v566, 0
  %594 = vmatpush.bf16.msra.mxu0 0
  %595 = vmatpush.bf16.msra.mxu0 0
  %596 = vmatpush.bf16.msra.mxu0 0
  %597 = vmatpush.bf16.msra.mxu0 0
  %598 = vmatpush.bf16.msra.mxu0 %v586
  %599 = vmatpush.bf16.msra.mxu0 %v585
  %600 = vmatpush.bf16.msra.mxu0 %v584
  %601 = vmatpush.bf16.msra.mxu0 %v583
  %602 = vmatmul.bf16.gmra.mxu0 %v592
  %v603 = vpop.f32.mrf.mxu0
  %v604 = vadd.f32 0.0, %v603
  %v605 = vpop.f32.mrf.mxu0
  %v606 = vadd.f32 0.0, %v605
  %607 = vdwg.mxu0
  %v608 = vpack.c.bf16 %v604, %v604
  %v609 = vpack.c.bf16 %v606, %v606
  %v612 = vunpack.c.l.b16 %v608
  %v613 = vunpack.c.l.b16 %v609
  %v614 = vpack.c.b16 %v613, %v612
  %v632 = vunpack.c.l.b16 %v550
  %v633 = vunpack.c.l.b16 %v551
  %v634 = vunpack.c.l.b16 %v552
  %v635 = vunpack.c.l.b16 %v553
  %v636 = vunpack.c.l.b16 %v554
  %v637 = vunpack.c.l.b16 %v555
  %v638 = vunpack.c.l.b16 %v556
  %v639 = vunpack.c.l.b16 %v557
  %v640 = vunpack.c.l.b16 %v558
  %v641 = vunpack.c.l.b16 %v559
  %v642 = vunpack.c.l.b16 %v560
  %v643 = vunpack.c.l.b16 %v561
  %v644 = vunpack.c.l.b16 %v562
  %v645 = vunpack.c.l.b16 %v563
  %v646 = vunpack.c.l.b16 %v564
  %v647 = vunpack.c.l.b16 %v565
  %v648 = vpack.c.b16 %v633, %v632
  %v649 = vpack.c.b16 %v635, %v634
  %v650 = vpack.c.b16 %v637, %v636
  %v651 = vpack.c.b16 %v639, %v638
  %v652 = vpack.c.b16 %v641, %v640
  %v653 = vpack.c.b16 %v643, %v642
  %v654 = vpack.c.b16 %v645, %v644
  %v655 = vpack.c.b16 %v647, %v646
  %664 = vmatpush.bf16.msra.mxu0 %v655
  %665 = vmatpush.bf16.msra.mxu0 %v654
  %666 = vmatpush.bf16.msra.mxu0 %v653
  %667 = vmatpush.bf16.msra.mxu0 %v652
  %668 = vmatpush.bf16.msra.mxu0 %v651
  %669 = vmatpush.bf16.msra.mxu0 %v650
  %670 = vmatpush.bf16.msra.mxu0 %v649
  %671 = vmatpush.bf16.msra.mxu0 %v648
  %672 = vmatmul.bf16.gmra.mxu0 %v614
  %v673 = vpop.f32.mrf.mxu0
  %v674 = vadd.f32 0.0, %v673
  %v675 = vpop.f32.mrf.mxu0
  %v676 = vadd.f32 0.0, %v675
  %677 = vdwg.mxu0
  %680 = vrot.lane.b32.xlu0 %v674, 124
  %v681 = vpop.permute.xlu0 %680
  %682 = vrot.lane.b32.xlu0 %v676, 124
  %v683 = vpop.permute.xlu0 %682
  %686 = vxpose.xlu0.b32.start [1/16] %v681, 128
  %687 = vxpose.xlu0.b32.cont [2/16] %v683, 128
  %688 = vxpose.xlu0.b32.cont [3/16] 0.0, 128
  %689 = vxpose.xlu0.b32.cont [4/16] 0.0, 128
  %690 = vxpose.xlu0.b32.cont [5/16] 0.0, 128
  %691 = vxpose.xlu0.b32.cont [6/16] 0.0, 128
  %692 = vxpose.xlu0.b32.cont [7/16] 0.0, 128
  %693 = vxpose.xlu0.b32.cont [8/16] 0.0, 128
  %694 = vxpose.xlu0.b32.cont [9/16] 0.0, 128
  %695 = vxpose.xlu0.b32.cont [10/16] 0.0, 128
  %696 = vxpose.xlu0.b32.cont [11/16] 0.0, 128
  %697 = vxpose.xlu0.b32.cont [12/16] 0.0, 128
  %698 = vxpose.xlu0.b32.cont [13/16] 0.0, 128
  %699 = vxpose.xlu0.b32.cont [14/16] 0.0, 128
  %700 = vxpose.xlu0.b32.cont [15/16] 0.0, 128
  %701 = vxpose.xlu0.b32.end [16/16] 0.0, 128
  %v702 = vpop.trf.xlu0
  %v703 = vpop.trf.xlu0
  %v704 = vpop.trf.xlu0
  %v705 = vpop.trf.xlu0
  %v706 = vpop.trf.xlu0
  %v707 = vpop.trf.xlu0
  %v708 = vpop.trf.xlu0
  %v709 = vpop.trf.xlu0
  %v710 = vpop.trf.xlu0
  %v711 = vpop.trf.xlu0
  %v712 = vpop.trf.xlu0
  %v713 = vpop.trf.xlu0
  %v714 = vpop.trf.xlu0
  %v715 = vpop.trf.xlu0
  %v716 = vpop.trf.xlu0
  %v717 = vpop.trf.xlu0
  %718 = vset.pattern.permute.xlu0 0
  %719 = vperm.xlu0 %718, %v674
  %v720 = vpop.permute.xlu0 %719
  %722 = vset.pattern.permute.xlu0 0
  %723 = vperm.xlu0 %722, %v676
  %v724 = vpop.permute.xlu0 %723
  %v726 = vperm.slane %v702, 0
  %v727 = vadd.f32 %v720, %v726
  %v728 = vadd.f32 %v724, %v726
  %729 = vset.pattern.permute.xlu0 1
  %730 = vperm.xlu0 %729, %v674
  %v731 = vpop.permute.xlu0 %730
  %733 = vset.pattern.permute.xlu0 1
  %734 = vperm.xlu0 %733, %v676
  %v735 = vpop.permute.xlu0 %734
  %v737 = vperm.slane %v702, 1
  %v738 = vadd.f32 %v731, %v737
  %v739 = vadd.f32 %v735, %v737
  %740 = vset.pattern.permute.xlu0 2
  %741 = vperm.xlu0 %740, %v674
  %v742 = vpop.permute.xlu0 %741
  %744 = vset.pattern.permute.xlu0 2
  %745 = vperm.xlu0 %744, %v676
  %v746 = vpop.permute.xlu0 %745
  %v748 = vperm.slane %v702, 2
  %v749 = vadd.f32 %v742, %v748
  %v750 = vadd.f32 %v746, %v748
  %751 = vset.pattern.permute.xlu0 3
  %752 = vperm.xlu0 %751, %v674
  %v753 = vpop.permute.xlu0 %752
  %755 = vset.pattern.permute.xlu0 3
  %756 = vperm.xlu0 %755, %v676
  %v757 = vpop.permute.xlu0 %756
  %v759 = vperm.slane %v702, 3
  %v760 = vadd.f32 %v753, %v759
  %v761 = vadd.f32 %v757, %v759
  %vm762 = vcmp.gt.f32.partialorder %v727, 0.0
  %vm763 = vcmp.gt.f32.partialorder %v728, 0.0
  %vm764 = vcmp.gt.f32.partialorder %v738, 0.0
  %vm765 = vcmp.gt.f32.partialorder %v739, 0.0
  %vm766 = vcmp.gt.f32.partialorder %v749, 0.0
  %vm767 = vcmp.gt.f32.partialorder %v750, 0.0
  %vm768 = vcmp.gt.f32.partialorder %v760, 0.0
  %vm769 = vcmp.gt.f32.partialorder %v761, 0.0
  %v770 = vmul.f32 %v727, 0.2
  %v771 = vmul.f32 %v728, 0.2
  %v772 = vmul.f32 %v738, 0.2
  %v773 = vmul.f32 %v739, 0.2
  %v774 = vmul.f32 %v749, 0.2
  %v775 = vmul.f32 %v750, 0.2
  %v776 = vmul.f32 %v760, 0.2
  %v777 = vmul.f32 %v761, 0.2
  %v778 = vsel %vm762, %v727, %v770
  %v779 = vsel %vm763, %v728, %v771
  %v780 = vsel %vm764, %v738, %v772
  %v781 = vsel %vm765, %v739, %v773
  %v782 = vsel %vm766, %v749, %v774
  %v783 = vsel %vm767, %v750, %v775
  %v784 = vsel %vm768, %v760, %v776
  %v785 = vsel %vm769, %v761, %v777
  %v786 = vadd.f32 %v778, %v252
  %v787 = vadd.f32 %v779, %v253
  %v788 = vadd.f32 %v780, %v252
  %v789 = vadd.f32 %v781, %v253
  %v790 = vadd.f32 %v782, %v252
  %v791 = vadd.f32 %v783, %v253
  %v792 = vadd.f32 %v784, %v252
  %v793 = vadd.f32 %v785, %v253
  %v794 = vsel %vm423, %v786, -inf
  %795 = vmax.xlane.f32.xlu0 %v794
  %v796 = vpop.xlane.xlu0 %795
  %v797 = vsel %vm423, %v787, -inf
  %798 = vmax.xlane.f32.xlu0 %v797
  %v799 = vpop.xlane.xlu0 %798
  %v800 = vsel %vm423, %v788, -inf
  %801 = vmax.xlane.f32.xlu0 %v800
  %v802 = vpop.xlane.xlu0 %801
  %v803 = vsel %vm423, %v789, -inf
  %804 = vmax.xlane.f32.xlu0 %v803
  %v805 = vpop.xlane.xlu0 %804
  %v806 = vsel %vm423, %v790, -inf
  %807 = vmax.xlane.f32.xlu0 %v806
  %v808 = vpop.xlane.xlu0 %807
  %v809 = vsel %vm423, %v791, -inf
  %810 = vmax.xlane.f32.xlu0 %v809
  %v811 = vpop.xlane.xlu0 %810
  %v812 = vsel %vm423, %v792, -inf
  %813 = vmax.xlane.f32.xlu0 %v812
  %v814 = vpop.xlane.xlu0 %813
  %v815 = vsel %vm423, %v793, -inf
  %816 = vmax.xlane.f32.xlu0 %v815
  %v817 = vpop.xlane.xlu0 %816
  %v818 = vsub.f32 %v786, %v796
  %v819 = vsub.f32 %v787, %v799
  %v820 = vsub.f32 %v788, %v802
  %v821 = vsub.f32 %v789, %v805
  %v822 = vsub.f32 %v790, %v808
  %v823 = vsub.f32 %v791, %v811
  %v824 = vsub.f32 %v792, %v814
  %v825 = vsub.f32 %v793, %v817
  %v826 = vmul.f32 %v818, 1.442695
  %v827 = vpow.pop %v826
  %v828 = vmul.f32 %v819, 1.442695
  %v829 = vpow.pop %v828
  %v830 = vmul.f32 %v820, 1.442695
  %v831 = vpow.pop %v830
  %v832 = vmul.f32 %v821, 1.442695
  %v833 = vpow.pop %v832
  %v834 = vmul.f32 %v822, 1.442695
  %v835 = vpow.pop %v834
  %v836 = vmul.f32 %v823, 1.442695
  %v837 = vpow.pop %v836
  %v838 = vmul.f32 %v824, 1.442695
  %v839 = vpow.pop %v838
  %v840 = vmul.f32 %v825, 1.442695
  %v841 = vpow.pop %v840
  %v842 = vsel %vm423, %v827, 0.0
  %843 = vadd.xlane.f32.xlu0 %v842
  %v844 = vpop.xlane.xlu0 %843
  %v845 = vsel %vm423, %v829, 0.0
  %846 = vadd.xlane.f32.xlu0 %v845
  %v847 = vpop.xlane.xlu0 %846
  %v848 = vsel %vm423, %v831, 0.0
  %849 = vadd.xlane.f32.xlu0 %v848
  %v850 = vpop.xlane.xlu0 %849
  %v851 = vsel %vm423, %v833, 0.0
  %852 = vadd.xlane.f32.xlu0 %v851
  %v853 = vpop.xlane.xlu0 %852
  %v854 = vsel %vm423, %v835, 0.0
  %855 = vadd.xlane.f32.xlu0 %v854
  %v856 = vpop.xlane.xlu0 %855
  %v857 = vsel %vm423, %v837, 0.0
  %858 = vadd.xlane.f32.xlu0 %v857
  %v859 = vpop.xlane.xlu0 %858
  %v860 = vsel %vm423, %v839, 0.0
  %861 = vadd.xlane.f32.xlu0 %v860
  %v862 = vpop.xlane.xlu0 %861
  %v863 = vsel %vm423, %v841, 0.0
  %864 = vadd.xlane.f32.xlu0 %v863
  %v865 = vpop.xlane.xlu0 %864
  %v866 = vrcp.pop %v844
  %v867 = vrcp.pop %v847
  %v868 = vrcp.pop %v850
  %v869 = vrcp.pop %v853
  %v870 = vrcp.pop %v856
  %v871 = vrcp.pop %v859
  %v872 = vrcp.pop %v862
  %v873 = vrcp.pop %v865
  %v874 = vmul.f32 %v827, %v866
  %v875 = vmul.f32 %v829, %v867
  %v876 = vmul.f32 %v831, %v868
  %v877 = vmul.f32 %v833, %v869
  %v878 = vmul.f32 %v835, %v870
  %v879 = vmul.f32 %v837, %v871
  %v880 = vmul.f32 %v839, %v872
  %v881 = vmul.f32 %v841, %v873
  %v882 = vpack.c.bf16 %v874, %v874
  %v883 = vpack.c.bf16 %v875, %v875
  %v884 = vpack.c.bf16 %v876, %v876
  %v885 = vpack.c.bf16 %v877, %v877
  %v886 = vpack.c.bf16 %v878, %v878
  %v887 = vpack.c.bf16 %v879, %v879
  %v888 = vpack.c.bf16 %v880, %v880
  %v889 = vpack.c.bf16 %v881, %v881
  %v892 = vunpack.c.l.b16 %v882
  %v893 = vunpack.c.l.b16 %v883
  %v894 = vpack.c.b16 %v893, %v892
  %v896 = vsel %vm423, %v894, 0
  %898 = vmatpush.bf16.msra.mxu0 0
  %899 = vmatpush.bf16.msra.mxu0 0
  %900 = vmatpush.bf16.msra.mxu0 0
  %901 = vmatpush.bf16.msra.mxu0 0
  %902 = vmatpush.bf16.msra.mxu0 0
  %903 = vmatpush.bf16.msra.mxu0 0
  %904 = vmatpush.bf16.msra.mxu0 0
  %905 = vmatpush.bf16.msra.mxu0 %v614
  %906 = vmatmul.bf16.gmra.mxu0 %v896
  %v907 = vpop.f32.mrf.mxu0
  %v908 = vadd.f32 0.0, %v907
  %v909 = vpop.f32.mrf.mxu0
  %v910 = vadd.f32 0.0, %v909
  %911 = vdwg.mxu0
  %v914 = vunpack.c.l.b16 %v884
  %v915 = vunpack.c.l.b16 %v885
  %v916 = vpack.c.b16 %v915, %v914
  %917 = vrot.lane.b32.xlu0 %v614, 96
  %v918 = vpop.permute.xlu0 %917
  %v921 = vsel %vm423, %v916, 0
  %923 = vmatpush.bf16.msra.mxu0 0
  %924 = vmatpush.bf16.msra.mxu0 0
  %925 = vmatpush.bf16.msra.mxu0 0
  %926 = vmatpush.bf16.msra.mxu0 0
  %927 = vmatpush.bf16.msra.mxu0 0
  %928 = vmatpush.bf16.msra.mxu0 0
  %929 = vmatpush.bf16.msra.mxu0 0
  %930 = vmatpush.bf16.msra.mxu0 %v918
  %931 = vmatmul.bf16.gmra.mxu0 %v921
  %v932 = vpop.f32.mrf.mxu0
  %v933 = vadd.f32 0.0, %v932
  %v934 = vpop.f32.mrf.mxu0
  %v935 = vadd.f32 0.0, %v934
  %936 = vdwg.mxu0
  %v939 = vunpack.c.l.b16 %v886
  %v940 = vunpack.c.l.b16 %v887
  %v941 = vpack.c.b16 %v940, %v939
  %942 = vrot.lane.b32.xlu0 %v614, 64
  %v943 = vpop.permute.xlu0 %942
  %v946 = vsel %vm423, %v941, 0
  %948 = vmatpush.bf16.msra.mxu0 0
  %949 = vmatpush.bf16.msra.mxu0 0
  %950 = vmatpush.bf16.msra.mxu0 0
  %951 = vmatpush.bf16.msra.mxu0 0
  %952 = vmatpush.bf16.msra.mxu0 0
  %953 = vmatpush.bf16.msra.mxu0 0
  %954 = vmatpush.bf16.msra.mxu0 0
  %955 = vmatpush.bf16.msra.mxu0 %v943
  %956 = vmatmul.bf16.gmra.mxu0 %v946
  %v957 = vpop.f32.mrf.mxu0
  %v958 = vadd.f32 0.0, %v957
  %v959 = vpop.f32.mrf.mxu0
  %v960 = vadd.f32 0.0, %v959
  %961 = vdwg.mxu0
  %v964 = vunpack.c.l.b16 %v888
  %v965 = vunpack.c.l.b16 %v889
  %v966 = vpack.c.b16 %v965, %v964
  %967 = vrot.lane.b32.xlu0 %v614, 32
  %v968 = vpop.permute.xlu0 %967
  %v971 = vsel %vm423, %v966, 0
  %973 = vmatpush.bf16.msra.mxu0 0
  %974 = vmatpush.bf16.msra.mxu0 0
  %975 = vmatpush.bf16.msra.mxu0 0
  %976 = vmatpush.bf16.msra.mxu0 0
  %977 = vmatpush.bf16.msra.mxu0 0
  %978 = vmatpush.bf16.msra.mxu0 0
  %979 = vmatpush.bf16.msra.mxu0 0
  %980 = vmatpush.bf16.msra.mxu0 %v968
  %981 = vmatmul.bf16.gmra.mxu0 %v971
  %v982 = vpop.f32.mrf.mxu0
  %v983 = vadd.f32 0.0, %v982
  %v984 = vpop.f32.mrf.mxu0
  %v985 = vadd.f32 0.0, %v984
  %986 = vdwg.mxu0
  %989 = vrot.lane.b32.xlu0 %v933, 32
  %v990 = vpop.permute.xlu0 %989
  %991 = vrot.lane.b32.xlu0 %v935, 32
  %v992 = vpop.permute.xlu0 %991
  %997 = vrot.lane.b32.xlu0 %v958, 64
  %v998 = vpop.permute.xlu0 %997
  %999 = vrot.lane.b32.xlu0 %v960, 64
  %v1000 = vpop.permute.xlu0 %999
  %1005 = vrot.lane.b32.xlu0 %v983, 96
  %v1006 = vpop.permute.xlu0 %1005
  %1007 = vrot.lane.b32.xlu0 %v985, 96
  %v1008 = vpop.permute.xlu0 %1007
  %v1011 = vsel %vm279, %v908, %v990
  %v1012 = vsel %vm279, %v910, %v992
  %v1013 = vsel %vm212, %v1011, %v998
  %v1014 = vsel %vm212, %v1012, %v1000
  %vm1015 = vcmask 785408
  %v1016 = vsel %vm1015, %v1013, %v1006
  %v1017 = vsel %vm1015, %v1014, %v1008
  %v1018 = vld [vmem:[%s8] sm:$0x3]
  %v1019 = vld [vmem:[%s9] sm:$0x3]
  %1020 = vset.pattern.permute.xlu0 0
  %1021 = vperm.xlu0 %1020, %v1018
  %v1022 = vpop.permute.xlu0 %1021
  %vm1023 = vcmp.eq.s32.totalorder %v56, %v1022
  %v1024 = vsel %vm1023, 1, 0
  %v1025 = vcvt.s32.f32 %v1024
  %v1026 = vpack.c.bf16 %v1025, %v1025
  %v1027 = vpack.c.bf16 %v1017, %v1016
  %v1029 = vsel %vm423, %v1026, 0
  %1031 = vmatpush.bf16.msra.mxu0 0
  %1032 = vmatpush.bf16.msra.mxu0 0
  %1033 = vmatpush.bf16.msra.mxu0 0
  %1034 = vmatpush.bf16.msra.mxu0 0
  %1035 = vmatpush.bf16.msra.mxu0 0
  %1036 = vmatpush.bf16.msra.mxu0 0
  %1037 = vmatpush.bf16.msra.mxu0 0
  %1038 = vmatpush.bf16.msra.mxu0 %v1027
  %1039 = vmatmul.bf16.gmra.mxu0 %v1029
  %v1040 = vpop.f32.mrf.mxu0
  %v1041 = vadd.f32 0.0, %v1040
  %v1042 = vpop.f32.mrf.mxu0
  %1043 = vdwg.mxu0
  %vm1044 = vcmp.eq.s32.totalorder %v1019, 0
  %v1045 = vsel %vm1044, 1, 0
  %v1046 = vcvt.s32.f32 %v1045
  %1048 = vset.pattern.permute.xlu0 0
  %1049 = vperm.xlu0 %1048, %v1046
  %v1050 = vpop.permute.xlu0 %1049
  %v1052 = vmul.f32 %v1050, %v1041
  %v1053 = vadd.f32 %v1052, 0.0
  %vm1054 = vcmp.eq.s32.totalorder %v1019, 1
  %v1055 = vsel %vm1054, 1, 0
  %v1056 = vcvt.s32.f32 %v1055
  %1058 = vset.pattern.permute.xlu0 0
  %1059 = vperm.xlu0 %1058, %v1056
  %v1060 = vpop.permute.xlu0 %1059
  %v1062 = vmul.f32 %v1060, %v1041
  %1064 = vrot.lane.b32.xlu0 %v1062, 96
  %v1065 = vpop.permute.xlu0 %1064
  %v1067 = vadd.f32 %v1053, %v1065
  %vm1068 = vcmp.eq.s32.totalorder %v1019, 2
  %v1069 = vsel %vm1068, 1, 0
  %v1070 = vcvt.s32.f32 %v1069
  %1072 = vset.pattern.permute.xlu0 0
  %1073 = vperm.xlu0 %1072, %v1070
  %v1074 = vpop.permute.xlu0 %1073
  %v1076 = vmul.f32 %v1074, %v1041
  %1078 = vrot.lane.b32.xlu0 %v1076, 64
  %v1079 = vpop.permute.xlu0 %1078
  %v1081 = vadd.f32 %v1067, %v1079
  %vm1082 = vcmp.eq.s32.totalorder %v1019, 3
  %v1083 = vsel %vm1082, 1, 0
  %v1084 = vcvt.s32.f32 %v1083
  %1086 = vset.pattern.permute.xlu0 0
  %1087 = vperm.xlu0 %1086, %v1084
  %v1088 = vpop.permute.xlu0 %1087
  %v1090 = vmul.f32 %v1088, %v1041
  %1092 = vrot.lane.b32.xlu0 %v1090, 32
  %v1093 = vpop.permute.xlu0 %1092
  %v1095 = vadd.f32 %v1081, %v1093
  %v1096 = vld [vmem:[%s11] sm:$0xf]
  %v1097 = vld [vmem:[%s11 + $0x4] sm:$0xf]
  %v1098 = vld [vmem:[%s11 + $0x8] sm:$0xf]
  %v1099 = vld [vmem:[%s11 + $0xc] sm:$0xf]
  %v1100 = vld [vmem:[%s13] sm:$0xf]
  %v1101 = vld [vmem:[%s13 + $0x4] sm:$0xf]
  %v1102 = vld [vmem:[%s13 + $0x8] sm:$0xf]
  %v1103 = vld [vmem:[%s13 + $0xc] sm:$0xf]
  %v1104 = vpack.c.bf16 %v1095, %v1095
  %v1105 = vld [vmem:[%s10] sm:$0xf]
  %v1106 = vld [vmem:[%s10 + $0x4] sm:$0xf]
  %v1107 = vld [vmem:[%s10 + $0x8] sm:$0xf]
  %v1108 = vld [vmem:[%s10 + $0xc] sm:$0xf]
  %v1109 = vld [vmem:[%s12] sm:$0x1]
  %v1111 = vperm.slane %v1109, 0
  %v1117 = vunpack.c.l.b16 %v1105
  %v1118 = vunpack.c.l.b16 %v1106
  %v1119 = vunpack.c.l.b16 %v1107
  %v1120 = vunpack.c.l.b16 %v1108
  %v1121 = vpack.c.b16 %v1118, %v1117
  %v1122 = vpack.c.b16 %v1120, %v1119
  %v1126 = vsel %vm279, %v1104, 0
  %1128 = vmatpush.bf16.msra.mxu0 0
  %1129 = vmatpush.bf16.msra.mxu0 0
  %1130 = vmatpush.bf16.msra.mxu0 0
  %1131 = vmatpush.bf16.msra.mxu0 0
  %1132 = vmatpush.bf16.msra.mxu0 0
  %1133 = vmatpush.bf16.msra.mxu0 0
  %1134 = vmatpush.bf16.msra.mxu0 %v1122
  %1135 = vmatpush.bf16.msra.mxu0 %v1121
  %1136 = vmatmul.bf16.gmra.mxu0 %v1126
  %v1137 = vpop.f32.mrf.mxu0
  %v1138 = vadd.f32 %v1111, %v1137
  %v1139 = vpop.f32.mrf.mxu0
  %1140 = vdwg.mxu0
  %v1145 = vunpack.c.l.b16 %v1096
  %v1146 = vunpack.c.l.b16 %v1097
  %v1147 = vunpack.c.l.b16 %v1098
  %v1148 = vunpack.c.l.b16 %v1099
  %v1149 = vpack.c.b16 %v1146, %v1145
  %v1150 = vpack.c.b16 %v1148, %v1147
  %v1154 = vsel %vm279, 0, 0
  %1156 = vmatpush.bf16.msra.mxu0 0
  %1157 = vmatpush.bf16.msra.mxu0 0
  %1158 = vmatpush.bf16.msra.mxu0 0
  %1159 = vmatpush.bf16.msra.mxu0 0
  %1160 = vmatpush.bf16.msra.mxu0 0
  %1161 = vmatpush.bf16.msra.mxu0 0
  %1162 = vmatpush.bf16.msra.mxu0 %v1150
  %1163 = vmatpush.bf16.msra.mxu0 %v1149
  %1164 = vmatmul.bf16.gmra.mxu0 %v1154
  %v1165 = vpop.f32.mrf.mxu0
  %v1166 = vadd.f32 0.0, %v1165
  %v1167 = vpop.f32.mrf.mxu0
  %1168 = vdwg.mxu0
  %v1169 = vadd.f32 %v1138, %v1166
  %v1170 = vxor.u32 %v1169, 2147483648
  %v1171 = vmul.f32 %v1170, 1.442695
  %v1172 = vpow.pop %v1171
  %v1173 = vadd.f32 %v1172, 1.0
  %v1174 = vrcp.pop %v1173
  %v1175 = vmul.f32 %v1173, %v1174
  %v1176 = vsub.f32 1.0, %v1175
  %v1177 = vmul.f32 %v1174, %v1176
  %v1178 = vadd.f32 %v1174, %v1177
  %vm1179 = vweird.f32 %v1173
  %vm1180 = vweird.f32 %v1174
  %vm1181 = vmor %vm1179, %vm1180
  %v1182 = vsel %vm1181, %v1174, %v1178
  %v1183 = vand.u32 2147483647, %v1173
  %vm1184 = vcmp.eq.f32.partialorder %v1183, 8.507059e+37
  %v1185 = vand.u32 %v1173, 2147483648
  %v1186 = vor.u32 1.1754944e-38, %v1185
  %v1187 = vsel %vm1184, %v1186, %v1182
  %v1188 = vmul.f32 1.0, %v1187
  %v1189 = vtanh.pop %v1169
  %v1190 = vmul.f32 %v1188, 0.0
  %1192 = vrot.lane.b32.xlu0 %v1189, 64
  %v1193 = vpop.permute.xlu0 %1192
  %v1195 = vmul.f32 %v1188, %v1193
  %1197 = vrot.lane.b32.xlu0 %v1195, 32
  %v1198 = vpop.permute.xlu0 %1197
  %v1200 = vadd.f32 %v1190, %v1198
  %v1201 = vtanh.pop %v1200
  %1203 = vrot.lane.b32.xlu0 %v1201, 64
  %v1204 = vpop.permute.xlu0 %1203
  %v1206 = vmul.f32 %v1188, %v1204
  %v1207 = vpack.c.bf16 %v1206, %v1206
  %1209 = vrot.lane.b32.xlu0 %v1207, 32
  %v1210 = vpop.permute.xlu0 %1209
  %v1215 = vunpack.c.l.b16 %v1100
  %v1216 = vunpack.c.l.b16 %v1101
  %v1217 = vunpack.c.l.b16 %v1102
  %v1218 = vunpack.c.l.b16 %v1103
  %v1219 = vpack.c.b16 %v1216, %v1215
  %v1220 = vpack.c.b16 %v1218, %v1217
  %v1224 = vsel %vm279, %v1210, 0
  %1226 = vmatpush.bf16.msra.mxu0 0
  %1227 = vmatpush.bf16.msra.mxu0 0
  %1228 = vmatpush.bf16.msra.mxu0 0
  %1229 = vmatpush.bf16.msra.mxu0 0
  %1230 = vmatpush.bf16.msra.mxu0 0
  %1231 = vmatpush.bf16.msra.mxu0 0
  %1232 = vmatpush.bf16.msra.mxu0 %v1220
  %1233 = vmatpush.bf16.msra.mxu0 %v1219
  %1234 = vmatmul.bf16.gmra.mxu0 %v1224
  %v1235 = vpop.f32.mrf.mxu0
  %v1236 = vadd.f32 0.0, %v1235
  %v1237 = vpop.f32.mrf.mxu0
  %1238 = vdwg.mxu0
  %1239 = vmatpush.bf16.msra.mxu0 0
  %1240 = vmatpush.bf16.msra.mxu0 0
  %1241 = vmatpush.bf16.msra.mxu0 0
  %1242 = vmatpush.bf16.msra.mxu0 0
  %1243 = vmatpush.bf16.msra.mxu0 0
  %1244 = vmatpush.bf16.msra.mxu0 0
  %1245 = vmatpush.bf16.msra.mxu0 %v1150
  %1246 = vmatpush.bf16.msra.mxu0 %v1149
  %1247 = vmatmul.bf16.gmra.mxu0 %v1224
  %v1248 = vpop.f32.mrf.mxu0
  %v1249 = vadd.f32 0.0, %v1248
  %v1250 = vpop.f32.mrf.mxu0
  %1251 = vdwg.mxu0
  %v1252 = vadd.f32 %v1138, %v1249
  %v1253 = vxor.u32 %v1252, 2147483648
  %v1254 = vmul.f32 %v1253, 1.442695
  %v1255 = vpow.pop %v1254
  %v1256 = vadd.f32 %v1255, 1.0
  %v1257 = vrcp.pop %v1256
  %v1258 = vmul.f32 %v1256, %v1257
  %v1259 = vsub.f32 1.0, %v1258
  %v1260 = vmul.f32 %v1257, %v1259
  %v1261 = vadd.f32 %v1257, %v1260
  %vm1262 = vweird.f32 %v1256
  %vm1263 = vweird.f32 %v1257
  %vm1264 = vmor %vm1262, %vm1263
  %v1265 = vsel %vm1264, %v1257, %v1261
  %v1266 = vand.u32 2147483647, %v1256
  %vm1267 = vcmp.eq.f32.partialorder %v1266, 8.507059e+37
  %v1268 = vand.u32 %v1256, 2147483648
  %v1269 = vor.u32 1.1754944e-38, %v1268
  %v1270 = vsel %vm1267, %v1269, %v1265
  %v1271 = vmul.f32 1.0, %v1270
  %v1272 = vtanh.pop %v1252
  %v1273 = vmul.f32 %v1271, %v1200
  %1275 = vrot.lane.b32.xlu0 %v1272, 64
  %v1276 = vpop.permute.xlu0 %1275
  %v1278 = vmul.f32 %v1271, %v1276
  %1280 = vrot.lane.b32.xlu0 %v1278, 32
  %v1281 = vpop.permute.xlu0 %1280
  %v1283 = vadd.f32 %v1273, %v1281
  %v1284 = vtanh.pop %v1283
  %1286 = vrot.lane.b32.xlu0 %v1284, 64
  %v1287 = vpop.permute.xlu0 %1286
  %v1289 = vmul.f32 %v1271, %v1287
  %v1290 = vpack.c.bf16 %v1289, %v1289
  %1292 = vrot.lane.b32.xlu0 %v1290, 32
  %v1293 = vpop.permute.xlu0 %1292
  %v1295 = vsel %vm279, %v1293, 0
  %1297 = vmatpush.bf16.msra.mxu0 0
  %1298 = vmatpush.bf16.msra.mxu0 0
  %1299 = vmatpush.bf16.msra.mxu0 0
  %1300 = vmatpush.bf16.msra.mxu0 0
  %1301 = vmatpush.bf16.msra.mxu0 0
  %1302 = vmatpush.bf16.msra.mxu0 0
  %1303 = vmatpush.bf16.msra.mxu0 %v1220
  %1304 = vmatpush.bf16.msra.mxu0 %v1219
  %1305 = vmatmul.bf16.gmra.mxu0 %v1295
  %v1306 = vpop.f32.mrf.mxu0
  %v1307 = vadd.f32 0.0, %v1306
  %v1308 = vpop.f32.mrf.mxu0
  %1309 = vdwg.mxu0
  %1310 = vmatpush.bf16.msra.mxu0 0
  %1311 = vmatpush.bf16.msra.mxu0 0
  %1312 = vmatpush.bf16.msra.mxu0 0
  %1313 = vmatpush.bf16.msra.mxu0 0
  %1314 = vmatpush.bf16.msra.mxu0 0
  %1315 = vmatpush.bf16.msra.mxu0 0
  %1316 = vmatpush.bf16.msra.mxu0 %v1150
  %1317 = vmatpush.bf16.msra.mxu0 %v1149
  %1318 = vmatmul.bf16.gmra.mxu0 %v1295
  %v1319 = vpop.f32.mrf.mxu0
  %v1320 = vadd.f32 0.0, %v1319
  %v1321 = vpop.f32.mrf.mxu0
  %1322 = vdwg.mxu0
  %v1323 = vadd.f32 %v1138, %v1320
  %v1324 = vxor.u32 %v1323, 2147483648
  %v1325 = vmul.f32 %v1324, 1.442695
  %v1326 = vpow.pop %v1325
  %v1327 = vadd.f32 %v1326, 1.0
  %v1328 = vrcp.pop %v1327
  %v1329 = vmul.f32 %v1327, %v1328
  %v1330 = vsub.f32 1.0, %v1329
  %v1331 = vmul.f32 %v1328, %v1330
  %v1332 = vadd.f32 %v1328, %v1331
  %vm1333 = vweird.f32 %v1327
  %vm1334 = vweird.f32 %v1328
  %vm1335 = vmor %vm1333, %vm1334
  %v1336 = vsel %vm1335, %v1328, %v1332
  %v1337 = vand.u32 2147483647, %v1327
  %vm1338 = vcmp.eq.f32.partialorder %v1337, 8.507059e+37
  %v1339 = vand.u32 %v1327, 2147483648
  %v1340 = vor.u32 1.1754944e-38, %v1339
  %v1341 = vsel %vm1338, %v1340, %v1336
  %v1342 = vmul.f32 1.0, %v1341
  %v1343 = vtanh.pop %v1323
  %v1344 = vmul.f32 %v1342, %v1283
  %1346 = vrot.lane.b32.xlu0 %v1343, 64
  %v1347 = vpop.permute.xlu0 %1346
  %v1349 = vmul.f32 %v1342, %v1347
  %1351 = vrot.lane.b32.xlu0 %v1349, 32
  %v1352 = vpop.permute.xlu0 %1351
  %v1354 = vadd.f32 %v1344, %v1352
  %v1355 = vtanh.pop %v1354
  %1357 = vrot.lane.b32.xlu0 %v1355, 64
  %v1358 = vpop.permute.xlu0 %1357
  %v1360 = vmul.f32 %v1342, %v1358
  %v1361 = vpack.c.bf16 %v1360, %v1360
  %1363 = vrot.lane.b32.xlu0 %v1361, 32
  %v1364 = vpop.permute.xlu0 %1363
  %v1366 = vsel %vm279, %v1364, 0
  %1368 = vmatpush.bf16.msra.mxu0 0
  %1369 = vmatpush.bf16.msra.mxu0 0
  %1370 = vmatpush.bf16.msra.mxu0 0
  %1371 = vmatpush.bf16.msra.mxu0 0
  %1372 = vmatpush.bf16.msra.mxu0 0
  %1373 = vmatpush.bf16.msra.mxu0 0
  %1374 = vmatpush.bf16.msra.mxu0 %v1220
  %1375 = vmatpush.bf16.msra.mxu0 %v1219
  %1376 = vmatmul.bf16.gmra.mxu0 %v1366
  %v1377 = vpop.f32.mrf.mxu0
  %v1378 = vadd.f32 0.0, %v1377
  %v1379 = vpop.f32.mrf.mxu0
  %1380 = vdwg.mxu0
  %1381 = vmatpush.bf16.msra.mxu0 0
  %1382 = vmatpush.bf16.msra.mxu0 0
  %1383 = vmatpush.bf16.msra.mxu0 0
  %1384 = vmatpush.bf16.msra.mxu0 0
  %1385 = vmatpush.bf16.msra.mxu0 0
  %1386 = vmatpush.bf16.msra.mxu0 0
  %1387 = vmatpush.bf16.msra.mxu0 %v1150
  %1388 = vmatpush.bf16.msra.mxu0 %v1149
  %1389 = vmatmul.bf16.gmra.mxu0 %v1366
  %v1390 = vpop.f32.mrf.mxu0
  %v1391 = vadd.f32 0.0, %v1390
  %v1392 = vpop.f32.mrf.mxu0
  %1393 = vdwg.mxu0
  %v1394 = vadd.f32 %v1138, %v1391
  %v1395 = vxor.u32 %v1394, 2147483648
  %v1396 = vmul.f32 %v1395, 1.442695
  %v1397 = vpow.pop %v1396
  %v1398 = vadd.f32 %v1397, 1.0
  %v1399 = vrcp.pop %v1398
  %v1400 = vmul.f32 %v1398, %v1399
  %v1401 = vsub.f32 1.0, %v1400
  %v1402 = vmul.f32 %v1399, %v1401
  %v1403 = vadd.f32 %v1399, %v1402
  %vm1404 = vweird.f32 %v1398
  %vm1405 = vweird.f32 %v1399
  %vm1406 = vmor %vm1404, %vm1405
  %v1407 = vsel %vm1406, %v1399, %v1403
  %v1408 = vand.u32 2147483647, %v1398
  %vm1409 = vcmp.eq.f32.partialorder %v1408, 8.507059e+37
  %v1410 = vand.u32 %v1398, 2147483648
  %v1411 = vor.u32 1.1754944e-38, %v1410
  %v1412 = vsel %vm1409, %v1411, %v1407
  %v1413 = vmul.f32 1.0, %v1412
  %v1414 = vtanh.pop %v1394
  %v1415 = vmul.f32 %v1413, %v1354
  %1417 = vrot.lane.b32.xlu0 %v1414, 64
  %v1418 = vpop.permute.xlu0 %1417
  %v1420 = vmul.f32 %v1413, %v1418
  %1422 = vrot.lane.b32.xlu0 %v1420, 32
  %v1423 = vpop.permute.xlu0 %1422
  %v1425 = vadd.f32 %v1415, %v1423
  %v1426 = vtanh.pop %v1425
  %1428 = vrot.lane.b32.xlu0 %v1426, 64
  %v1429 = vpop.permute.xlu0 %1428
  %v1431 = vmul.f32 %v1413, %v1429
  %v1432 = vpack.c.bf16 %v1431, %v1431
  %1434 = vrot.lane.b32.xlu0 %v1432, 32
  %v1435 = vpop.permute.xlu0 %1434
  %v1437 = vsel %vm279, %v1435, 0
  %1439 = vmatpush.bf16.msra.mxu0 0
  %1440 = vmatpush.bf16.msra.mxu0 0
  %1441 = vmatpush.bf16.msra.mxu0 0
  %1442 = vmatpush.bf16.msra.mxu0 0
  %1443 = vmatpush.bf16.msra.mxu0 0
  %1444 = vmatpush.bf16.msra.mxu0 0
  %1445 = vmatpush.bf16.msra.mxu0 %v1220
  %1446 = vmatpush.bf16.msra.mxu0 %v1219
  %1447 = vmatmul.bf16.gmra.mxu0 %v1437
  %v1448 = vpop.f32.mrf.mxu0
  %v1449 = vadd.f32 0.0, %v1448
  %v1450 = vpop.f32.mrf.mxu0
  %1451 = vdwg.mxu0
  %1452 = vmatpush.bf16.msra.mxu0 0
  %1453 = vmatpush.bf16.msra.mxu0 0
  %1454 = vmatpush.bf16.msra.mxu0 0
  %1455 = vmatpush.bf16.msra.mxu0 0
  %1456 = vmatpush.bf16.msra.mxu0 0
  %1457 = vmatpush.bf16.msra.mxu0 0
  %1458 = vmatpush.bf16.msra.mxu0 %v1150
  %1459 = vmatpush.bf16.msra.mxu0 %v1149
  %1460 = vmatmul.bf16.gmra.mxu0 %v1437
  %v1461 = vpop.f32.mrf.mxu0
  %v1462 = vadd.f32 0.0, %v1461
  %v1463 = vpop.f32.mrf.mxu0
  %1464 = vdwg.mxu0
  %v1465 = vadd.f32 %v1138, %v1462
  %v1466 = vxor.u32 %v1465, 2147483648
  %v1467 = vmul.f32 %v1466, 1.442695
  %v1468 = vpow.pop %v1467
  %v1469 = vadd.f32 %v1468, 1.0
  %v1470 = vrcp.pop %v1469
  %v1471 = vmul.f32 %v1469, %v1470
  %v1472 = vsub.f32 1.0, %v1471
  %v1473 = vmul.f32 %v1470, %v1472
  %v1474 = vadd.f32 %v1470, %v1473
  %vm1475 = vweird.f32 %v1469
  %vm1476 = vweird.f32 %v1470
  %vm1477 = vmor %vm1475, %vm1476
  %v1478 = vsel %vm1477, %v1470, %v1474
  %v1479 = vand.u32 2147483647, %v1469
  %vm1480 = vcmp.eq.f32.partialorder %v1479, 8.507059e+37
  %v1481 = vand.u32 %v1469, 2147483648
  %v1482 = vor.u32 1.1754944e-38, %v1481
  %v1483 = vsel %vm1480, %v1482, %v1478
  %v1484 = vmul.f32 1.0, %v1483
  %v1485 = vtanh.pop %v1465
  %v1486 = vmul.f32 %v1484, %v1425
  %1488 = vrot.lane.b32.xlu0 %v1485, 64
  %v1489 = vpop.permute.xlu0 %1488
  %v1491 = vmul.f32 %v1484, %v1489
  %1493 = vrot.lane.b32.xlu0 %v1491, 32
  %v1494 = vpop.permute.xlu0 %1493
  %v1496 = vadd.f32 %v1486, %v1494
  %v1497 = vtanh.pop %v1496
  %1499 = vrot.lane.b32.xlu0 %v1497, 64
  %v1500 = vpop.permute.xlu0 %1499
  %v1502 = vmul.f32 %v1484, %v1500
  %v1503 = vpack.c.bf16 %v1502, %v1502
  %1505 = vrot.lane.b32.xlu0 %v1503, 32
  %v1506 = vpop.permute.xlu0 %1505
  %v1508 = vsel %vm279, %v1506, 0
  %1510 = vmatpush.bf16.msra.mxu0 0
  %1511 = vmatpush.bf16.msra.mxu0 0
  %1512 = vmatpush.bf16.msra.mxu0 0
  %1513 = vmatpush.bf16.msra.mxu0 0
  %1514 = vmatpush.bf16.msra.mxu0 0
  %1515 = vmatpush.bf16.msra.mxu0 0
  %1516 = vmatpush.bf16.msra.mxu0 %v1220
  %1517 = vmatpush.bf16.msra.mxu0 %v1219
  %1518 = vmatmul.bf16.gmra.mxu0 %v1508
  %v1519 = vpop.f32.mrf.mxu0
  %v1520 = vadd.f32 0.0, %v1519
  %v1521 = vpop.f32.mrf.mxu0
  %1522 = vdwg.mxu0
  %v1524 = vrot.slane %v1236, 1
  %v1527 = vrot.slane %v1307, 1
  %v1529 = vrot.slane %v1378, 1
  %v1531 = vrot.slane %v1449, 1
  %v1533 = vrot.slane %v1520, 1
  %v1534 = vperm.slane %v1307, 0
  %v1535 = vperm.slane %v1527, 0
  %v1538 = vperm.slane %v1378, 0
  %v1539 = vperm.slane %v1529, 0
  %v1542 = vperm.slane %v1449, 0
  %v1543 = vperm.slane %v1531, 0
  %v1546 = vperm.slane %v1520, 0
  %v1547 = vperm.slane %v1533, 0
  %vm1550 = vcmask 1040384
  %v1551 = vsel %vm1550, %v1236, %v1534
  %v1552 = vsel %vm1550, %v1524, %v1535
  %vm1553 = vcmask 1041408
  %v1554 = vsel %vm1553, %v1551, %v1538
  %v1555 = vsel %vm1553, %v1552, %v1539
  %vm1556 = vcmask 1042432
  %v1557 = vsel %vm1556, %v1554, %v1542
  %v1558 = vsel %vm1556, %v1555, %v1543
  %vm1559 = vcmask 1043456
  %v1560 = vsel %vm1559, %v1557, %v1546
  %v1561 = vsel %vm1559, %v1558, %v1547
  %v1562 = vld [vmem:[%s14] sm:$0x1]
  %v1564 = vperm.slane %v1562, 0
  %v1566 = vadd.f32 %v1560, %v1564
  %v1567 = vadd.f32 %v1561, %v1564
  %1568 = vst [vmem:[%s15] sm:$0x1f] %v1566
  %1569 = vst [vmem:[%s15 + $0x8] sm:$0x1f] %v1567
  // Predicated region
  $region62: #{tpu_custom_call.1} parent=0 // pred_check
    _
  $region63: #{tpu_custom_call.1} parent=0 // pred_check_branch
    %1571 = sbr.rel (0) target = $region65
  $region64: #{tpu_custom_call.1} parent=0 // pred_region
    _
  $region65: #{tpu_custom_call.1} parent=0 // pred_fallthru
    _
  // Predicated region
  $region66: #{tpu_custom_call.1} parent=0 // pred_check
    _
  $region67: #{tpu_custom_call.1} parent=0 // pred_check_branch
    %1573 = sbr.rel (0) target = $region69
  $region68: #{tpu_custom_call.1} parent=0 // pred_region
    _
  $region69: #{tpu_custom_call.1} parent=0 // pred_fallthru
    _

</llo_original>
